<compile_context>
chip_gen: v5e
topology: v5e:2x2
jax: 0.10.0
libtpu: 0.0.40
codegen_flags: <defaults>
</compile_context>

<pallas_src>
import functools
import math

import jax
import jax.numpy as jnp
from jax import lax
from jax.experimental import pallas as pl
from jax.experimental.pallas import tpu as pltpu


def _round_up(x, m):
    return ((x + m - 1) // m) * m


def _generator_kernel(x_ref, wg_ref, bg_ref, wo_ref, bo_ref, out_ref, *, h_size):
    """Grid-less single-invocation kernel; all operands resident in VMEM.

    x_ref  : (S, Bp, Fp)    bf16  time-major, zero-padded inputs
    wg_ref : (Fp + H, Gp)   bf16  fused gate weight, columns [z | r | g_x | g_h]
    bg_ref : (1, Gp)        f32   fused gate bias,   columns [bz | br | 0 | bg]
    wo_ref : (H, Fp)        bf16  mask (Linear) weight
    bo_ref : (1, Fp)        f32   mask (Linear) bias
    out_ref: (S, Bp, Fp)    f32   stacked masks, time-major
    """
    S, Bp, Fp = x_ref.shape
    H = h_size

    # masks[0] = ones(batch, feature)
    out_ref[0] = jnp.ones((Bp, Fp), jnp.float32)

    def step(i, carry):
        h, mask = carry                                    # f32 (Bp, H), (Bp, Fp)
        # x*mask in f32 (portable to v5e), cast to bf16 only for the MXU.
        xm = (x_ref[i].astype(jnp.float32) * mask).astype(jnp.bfloat16)
        # One fused gate matmul: [xm | h] @ [[Wxz Wxr Wxg 0], [Whz Whr 0 Whg]].
        lhs = jnp.concatenate([xm, h.astype(jnp.bfloat16)], axis=1)  # (Bp, Fp+H)
        gates = jnp.dot(lhs, wg_ref[...],
                        preferred_element_type=jnp.float32) + bg_ref[...]
        z = jax.nn.sigmoid(gates[:, 0 * H:1 * H])
        r = jax.nn.sigmoid(gates[:, 1 * H:2 * H])
        g = jnp.tanh(gates[:, 2 * H:3 * H] + r * gates[:, 3 * H:4 * H])
        h_new = (1.0 - z) * g + z * h
        # mask = sigmoid(Linear(h)); .squeeze() in torch is a no-op for B>1, F>1.
        mask_new = jax.nn.sigmoid(
            jnp.dot(h_new.astype(jnp.bfloat16), wo_ref[...],
                    preferred_element_type=jnp.float32) + bo_ref[...])
        out_ref[i + 1] = mask_new
        return h_new, mask_new

    lax.fori_loop(
        0, S - 1, step,
        (jnp.zeros((Bp, H), jnp.float32), jnp.ones((Bp, Fp), jnp.float32)),
        unroll=True)


def generator_forward(inputs, params):
    """inputs: (batch, seq_len, feature) f32. Returns masks of shape (B, S, F)."""
    B, S, F = inputs.shape
    H = params["W_hz"].shape[1]

    Bp = _round_up(B, 8)        # full sublane group
    Fp = _round_up(F, 128)      # lane-dense feature (= mask/output) dim
    Gp = _round_up(4 * H, 128)  # jointly padded gate columns [z|r|g_x|g_h]

    # Fused gate weight: rows 0..Fp-1 take the x-weights, rows Fp..Fp+H-1 the
    # h-weights (zero rows/cols in all padding, so padded lanes stay inert).
    wx = jnp.concatenate([params["W_xz"], params["W_xr"], params["W_xg"],
                          jnp.zeros((F, H), jnp.float32)], axis=1)            # (F, 4H)
    wh = jnp.concatenate([params["W_hz"], params["W_hr"],
                          jnp.zeros((H, H), jnp.float32), params["W_hg"]],
                         axis=1)                                              # (H, 4H)
    w_gate = jnp.concatenate(
        [jnp.pad(wx, ((0, Fp - F), (0, Gp - 4 * H))),
         jnp.pad(wh, ((0, 0), (0, Gp - 4 * H)))],
        axis=0).astype(jnp.bfloat16)                                          # (Fp+H, Gp)

    b_gate = jnp.concatenate([params["bz"], params["br"],
                              jnp.zeros((H,), jnp.float32), params["bg"]])
    b_gate = jnp.pad(b_gate, (0, Gp - 4 * H))[None, :].astype(jnp.float32)    # (1, Gp)

    w_out = jnp.pad(params["W_out"], ((0, 0), (0, Fp - F))).astype(jnp.bfloat16)  # (H, Fp)
    b_out = jnp.pad(params["b_out"], (0, Fp - F))[None, :].astype(jnp.float32)    # (1, Fp)

    # Time-major, zero-padded, bf16 sequence (halves the largest VMEM block).
    x_tm = jnp.pad(jnp.transpose(inputs, (1, 0, 2)),
                   ((0, 0), (0, Bp - B), (0, Fp - F))).astype(jnp.bfloat16)

    kernel = functools.partial(_generator_kernel, h_size=H)

    flops = 2 * (S - 1) * Bp * ((Fp + H) * Gp + H * Fp)
    transcendentals = (S - 1) * Bp * (3 * H + Fp)
    bytes_accessed = (x_tm.size * 2 + w_gate.size * 2 + b_gate.size * 4
                      + w_out.size * 2 + b_out.size * 4 + S * Bp * Fp * 4)

    # Explicit scoped-VMEM limit: resident bytes + generous headroom, capped at
    # 64 MiB (<= physical VMEM on all of v5e/v6e/v7x).
    vmem_limit = int(min(max(2 * bytes_accessed, 16 * 1024 * 1024),
                         64 * 1024 * 1024))

    out_tm = pl.pallas_call(
        kernel,
        out_shape=jax.ShapeDtypeStruct((S, Bp, Fp), jnp.float32),
        compiler_params=pltpu.CompilerParams(vmem_limit_bytes=vmem_limit),
        cost_estimate=pl.CostEstimate(flops=int(flops),
                                      transcendentals=int(transcendentals),
                                      bytes_accessed=int(bytes_accessed)),
    )(x_tm, w_gate, b_gate, w_out, b_out)

    # Back to (B, S, F), dropping batch/feature padding.
    return jnp.transpose(out_tm, (1, 0, 2))[:B, :, :F]


def xavier_uniform(key, shape):
    fan_in, fan_out = shape
    limit = math.sqrt(6.0 / (fan_in + fan_out))
    return jax.random.uniform(key, shape, jnp.float32, -limit, limit)


def init_params(key, feature_size, hidden_size):
    F, H = feature_size, hidden_size
    keys = jax.random.split(key, 8)
    k = 1.0 / math.sqrt(H)
    return {
        "W_xz": xavier_uniform(keys[0], (F, H)),
        "W_hz": xavier_uniform(keys[1], (H, H)),
        "bz": jnp.zeros((H,), jnp.float32),
        "W_xr": xavier_uniform(keys[2], (F, H)),
        "W_hr": xavier_uniform(keys[3], (H, H)),
        "br": jnp.zeros((H,), jnp.float32),
        "W_xg": xavier_uniform(keys[4], (F, H)),
        "W_hg": xavier_uniform(keys[5], (H, H)),
        "bg": jnp.zeros((H,), jnp.float32),
        # nn.Linear(hidden, feature): weight stored pre-transposed as (H, F);
        # uniform(+-1/sqrt(H)) approximates PyTorch default init (not bit-exact).
        "W_out": jax.random.uniform(keys[6], (H, F), jnp.float32, -k, k),
        "b_out": jax.random.uniform(keys[7], (F,), jnp.float32, -k, k),
    }


def _reference_forward(inputs, params):
    """Plain-JAX f32 reference mirroring Generator.forward exactly."""
    B, S, F = inputs.shape
    H = params["W_hz"].shape[1]
    h = jnp.zeros((B, H), jnp.float32)
    mask = jnp.ones((B, F), jnp.float32)
    masks = [mask]
    for i in range(S - 1):
        x = inputs[:, i, :] * mask
        z = jax.nn.sigmoid(x @ params["W_xz"] + h @ params["W_hz"] + params["bz"])
        r = jax.nn.sigmoid(x @ params["W_xr"] + h @ params["W_hr"] + params["br"])
        g = jnp.tanh(x @ params["W_xg"] + r * (h @ params["W_hg"] + params["bg"]))
        h = (1.0 - z) * g + z * h
        mask = jax.nn.sigmoid(h @ params["W_out"] + params["b_out"])
        masks.append(mask)
    return jnp.stack(masks, axis=1)  # (B, S, F)


if __name__ == "__main__":
    batch, seq_len, feature_size, hidden_size = 4, 8, 16, 32

    key = jax.random.PRNGKey(0)
    k_in, k_p = jax.random.split(key)
    inputs = jax.random.normal(k_in, (batch, seq_len, feature_size), jnp.float32)
    params = init_params(k_p, feature_size, hidden_size)

    out = jax.block_until_ready(jax.jit(generator_forward)(inputs, params))
    ref = _reference_forward(inputs, params)

    assert out.shape == (batch, seq_len, feature_size)
    max_err = float(jnp.max(jnp.abs(out - ref)))
    assert jnp.allclose(out, ref, atol=2e-2, rtol=2e-2), (
        f"mismatch vs JAX reference, max abs diff = {max_err}")
    print("KERNEL_OK")
</pallas_src>

<mosaic_0001>
module attributes {stable_mosaic.version = 11 : i64} {
  func.func @_generator_kernel(%arg0: memref<8x8x128xbf16, #tpu.memory_space<vmem>>, %arg1: memref<160x128xbf16, #tpu.memory_space<vmem>>, %arg2: memref<1x128xf32, #tpu.memory_space<vmem>>, %arg3: memref<32x128xbf16, #tpu.memory_space<vmem>>, %arg4: memref<1x128xf32, #tpu.memory_space<vmem>>, %arg5: memref<8x8x128xf32, #tpu.memory_space<vmem>>) attributes {dimension_semantics = [], scalar_prefetch = 0 : i64, scratch_operands = 0 : i64, tpu.core_type = #tpu.core_type<tc>} {
    %cst = arith.constant 1.000000e+00 : f32
    %0 = vector.broadcast %cst : f32 to vector<8x128xf32>
    %c0 = arith.constant 0 : index
    %c0_0 = arith.constant 0 : index
    %c0_1 = arith.constant 0 : index
    %1 = vector.load %arg5[%c0, %c0_0, %c0_1] : memref<8x8x128xf32, #tpu.memory_space<vmem>>, vector<1x8x128xf32>
    %2 = vector.shape_cast %1 : vector<1x8x128xf32> to vector<8x128xf32>
    %3 = vector.shape_cast %0 : vector<8x128xf32> to vector<1x8x128xf32>
    tpu.vector_store %arg5[%c0, %c0_0, %c0_1], %3 {strides = array<i32>} : memref<8x8x128xf32, #tpu.memory_space<vmem>>, vector<1x8x128xf32>,
    %cst_2 = arith.constant 0.000000e+00 : f32
    %4 = vector.broadcast %cst_2 : f32 to vector<8x32xf32>
    %cst_3 = arith.constant 1.000000e+00 : f32
    %5 = vector.broadcast %cst_3 : f32 to vector<8x128xf32>
    %c0_i32 = arith.constant 0 : i32
    %6 = arith.index_cast %c0_i32 : i32 to index
    %c0_4 = arith.constant 0 : index
    %c0_5 = arith.constant 0 : index
    %7 = vector.load %arg0[%6, %c0_4, %c0_5] : memref<8x8x128xbf16, #tpu.memory_space<vmem>>, vector<1x8x128xbf16>
    %8 = vector.shape_cast %7 : vector<1x8x128xbf16> to vector<8x128xbf16>
    %9 = arith.extf %8 : vector<8x128xbf16> to vector<8x128xf32>
    %10 = arith.mulf %9, %5 : vector<8x128xf32>
    %11 = arith.truncf %10 : vector<8x128xf32> to vector<8x128xbf16>
    %12 = arith.truncf %4 : vector<8x32xf32> to vector<8x32xbf16>
    %13 = tpu.concatenate %11, %12 in 1 : vector<8x128xbf16>, vector<8x32xbf16> -> vector<8x160xbf16>
    %c0_6 = arith.constant 0 : index
    %c0_7 = arith.constant 0 : index
    %14 = vector.load %arg1[%c0_6, %c0_7] : memref<160x128xbf16, #tpu.memory_space<vmem>>, vector<160x128xbf16>
    %cst_8 = arith.constant dense<0.000000e+00> : vector<8x128xf32>
    %15 = tpu.matmul %13, %14, %cst_8 {dimension_numbers = #tpu.dot_dimension_numbers<[1], [0], [0], [1], [0, 0, 1, 1], [], []>} : vector<8x160xbf16>, vector<160x128xbf16>, vector<8x128xf32> -> vector<8x128xf32>
    %c0_9 = arith.constant 0 : index
    %c0_10 = arith.constant 0 : index
    %16 = vector.load %arg2[%c0_9, %c0_10] : memref<1x128xf32, #tpu.memory_space<vmem>>, vector<1x128xf32>
    %17 = vector.broadcast %16 : vector<1x128xf32> to vector<8x128xf32>
    %18 = arith.addf %15, %17 : vector<8x128xf32>
    %19 = vector.extract_strided_slice %18 {offsets = [0, 0], sizes = [8, 32], strides = [1, 1]} : vector<8x128xf32> to vector<8x32xf32>
    %20 = arith.negf %19 : vector<8x32xf32>
    %21 = math.exp %20 : vector<8x32xf32>
    %cst_11 = arith.constant 1.000000e+00 : f32
    %22 = vector.broadcast %cst_11 : f32 to vector<8x32xf32>
    %23 = arith.addf %22, %21 : vector<8x32xf32>
    %24 = arith.divf %22, %23 : vector<8x32xf32>
    %25 = vector.extract_strided_slice %18 {offsets = [0, 32], sizes = [8, 32], strides = [1, 1]} : vector<8x128xf32> to vector<8x32xf32>
    %26 = arith.negf %25 : vector<8x32xf32>
    %27 = math.exp %26 : vector<8x32xf32>
    %cst_12 = arith.constant 1.000000e+00 : f32
    %28 = vector.broadcast %cst_12 : f32 to vector<8x32xf32>
    %29 = arith.addf %28, %27 : vector<8x32xf32>
    %30 = arith.divf %28, %29 : vector<8x32xf32>
    %31 = vector.extract_strided_slice %18 {offsets = [0, 64], sizes = [8, 32], strides = [1, 1]} : vector<8x128xf32> to vector<8x32xf32>
    %32 = vector.extract_strided_slice %18 {offsets = [0, 96], sizes = [8, 32], strides = [1, 1]} : vector<8x128xf32> to vector<8x32xf32>
    %33 = arith.mulf %30, %32 : vector<8x32xf32>
    %34 = arith.addf %31, %33 : vector<8x32xf32>
    %35 = math.tanh %34 : vector<8x32xf32>
    %cst_13 = arith.constant 1.000000e+00 : f32
    %36 = vector.broadcast %cst_13 : f32 to vector<8x32xf32>
    %37 = arith.subf %36, %24 : vector<8x32xf32>
    %38 = arith.mulf %37, %35 : vector<8x32xf32>
    %39 = arith.mulf %24, %4 : vector<8x32xf32>
    %40 = arith.addf %38, %39 : vector<8x32xf32>
    %41 = arith.truncf %40 : vector<8x32xf32> to vector<8x32xbf16>
    %c0_14 = arith.constant 0 : index
    %c0_15 = arith.constant 0 : index
    %42 = vector.load %arg3[%c0_14, %c0_15] : memref<32x128xbf16, #tpu.memory_space<vmem>>, vector<32x128xbf16>
    %cst_16 = arith.constant dense<0.000000e+00> : vector<8x128xf32>
    %43 = tpu.matmul %41, %42, %cst_16 {dimension_numbers = #tpu.dot_dimension_numbers<[1], [0], [0], [1], [0, 0, 1, 1], [], []>} : vector<8x32xbf16>, vector<32x128xbf16>, vector<8x128xf32> -> vector<8x128xf32>
    %c0_17 = arith.constant 0 : index
    %c0_18 = arith.constant 0 : index
    %44 = vector.load %arg4[%c0_17, %c0_18] : memref<1x128xf32, #tpu.memory_space<vmem>>, vector<1x128xf32>
    %45 = vector.broadcast %44 : vector<1x128xf32> to vector<8x128xf32>
    %46 = arith.addf %43, %45 : vector<8x128xf32>
    %47 = arith.negf %46 : vector<8x128xf32>
    %48 = math.exp %47 : vector<8x128xf32>
    %cst_19 = arith.constant 1.000000e+00 : f32
    %49 = vector.broadcast %cst_19 : f32 to vector<8x128xf32>
    %50 = arith.addf %49, %48 : vector<8x128xf32>
    %51 = arith.divf %49, %50 : vector<8x128xf32>
    %c1_i32 = arith.constant 1 : i32
    %52 = arith.addi %c0_i32, %c1_i32 : i32
    %53 = arith.index_cast %52 : i32 to index
    %c0_20 = arith.constant 0 : index
    %c0_21 = arith.constant 0 : index
    %54 = vector.load %arg5[%53, %c0_20, %c0_21] : memref<8x8x128xf32, #tpu.memory_space<vmem>>, vector<1x8x128xf32>
    %55 = vector.shape_cast %54 : vector<1x8x128xf32> to vector<8x128xf32>
    %56 = vector.shape_cast %51 : vector<8x128xf32> to vector<1x8x128xf32>
    tpu.vector_store %arg5[%53, %c0_20, %c0_21], %56 {strides = array<i32>} : memref<8x8x128xf32, #tpu.memory_space<vmem>>, vector<1x8x128xf32>,
    %c1_i32_22 = arith.constant 1 : i32
    %57 = arith.index_cast %c1_i32_22 : i32 to index
    %c0_23 = arith.constant 0 : index
    %c0_24 = arith.constant 0 : index
    %58 = vector.load %arg0[%57, %c0_23, %c0_24] : memref<8x8x128xbf16, #tpu.memory_space<vmem>>, vector<1x8x128xbf16>
    %59 = vector.shape_cast %58 : vector<1x8x128xbf16> to vector<8x128xbf16>
    %60 = arith.extf %59 : vector<8x128xbf16> to vector<8x128xf32>
    %61 = arith.mulf %60, %51 : vector<8x128xf32>
    %62 = arith.truncf %61 : vector<8x128xf32> to vector<8x128xbf16>
    %63 = arith.truncf %40 : vector<8x32xf32> to vector<8x32xbf16>
    %64 = tpu.concatenate %62, %63 in 1 : vector<8x128xbf16>, vector<8x32xbf16> -> vector<8x160xbf16>
    %c0_25 = arith.constant 0 : index
    %c0_26 = arith.constant 0 : index
    %65 = vector.load %arg1[%c0_25, %c0_26] : memref<160x128xbf16, #tpu.memory_space<vmem>>, vector<160x128xbf16>
    %cst_27 = arith.constant dense<0.000000e+00> : vector<8x128xf32>
    %66 = tpu.matmul %64, %65, %cst_27 {dimension_numbers = #tpu.dot_dimension_numbers<[1], [0], [0], [1], [0, 0, 1, 1], [], []>} : vector<8x160xbf16>, vector<160x128xbf16>, vector<8x128xf32> -> vector<8x128xf32>
    %c0_28 = arith.constant 0 : index
    %c0_29 = arith.constant 0 : index
    %67 = vector.load %arg2[%c0_28, %c0_29] : memref<1x128xf32, #tpu.memory_space<vmem>>, vector<1x128xf32>
    %68 = vector.broadcast %67 : vector<1x128xf32> to vector<8x128xf32>
    %69 = arith.addf %66, %68 : vector<8x128xf32>
    %70 = vector.extract_strided_slice %69 {offsets = [0, 0], sizes = [8, 32], strides = [1, 1]} : vector<8x128xf32> to vector<8x32xf32>
    %71 = arith.negf %70 : vector<8x32xf32>
    %72 = math.exp %71 : vector<8x32xf32>
    %cst_30 = arith.constant 1.000000e+00 : f32
    %73 = vector.broadcast %cst_30 : f32 to vector<8x32xf32>
    %74 = arith.addf %73, %72 : vector<8x32xf32>
    %75 = arith.divf %73, %74 : vector<8x32xf32>
    %76 = vector.extract_strided_slice %69 {offsets = [0, 32], sizes = [8, 32], strides = [1, 1]} : vector<8x128xf32> to vector<8x32xf32>
    %77 = arith.negf %76 : vector<8x32xf32>
    %78 = math.exp %77 : vector<8x32xf32>
    %cst_31 = arith.constant 1.000000e+00 : f32
    %79 = vector.broadcast %cst_31 : f32 to vector<8x32xf32>
    %80 = arith.addf %79, %78 : vector<8x32xf32>
    %81 = arith.divf %79, %80 : vector<8x32xf32>
    %82 = vector.extract_strided_slice %69 {offsets = [0, 64], sizes = [8, 32], strides = [1, 1]} : vector<8x128xf32> to vector<8x32xf32>
    %83 = vector.extract_strided_slice %69 {offsets = [0, 96], sizes = [8, 32], strides = [1, 1]} : vector<8x128xf32> to vector<8x32xf32>
    %84 = arith.mulf %81, %83 : vector<8x32xf32>
    %85 = arith.addf %82, %84 : vector<8x32xf32>
    %86 = math.tanh %85 : vector<8x32xf32>
    %cst_32 = arith.constant 1.000000e+00 : f32
    %87 = vector.broadcast %cst_32 : f32 to vector<8x32xf32>
    %88 = arith.subf %87, %75 : vector<8x32xf32>
    %89 = arith.mulf %88, %86 : vector<8x32xf32>
    %90 = arith.mulf %75, %40 : vector<8x32xf32>
    %91 = arith.addf %89, %90 : vector<8x32xf32>
    %92 = arith.truncf %91 : vector<8x32xf32> to vector<8x32xbf16>
    %c0_33 = arith.constant 0 : index
    %c0_34 = arith.constant 0 : index
    %93 = vector.load %arg3[%c0_33, %c0_34] : memref<32x128xbf16, #tpu.memory_space<vmem>>, vector<32x128xbf16>
    %cst_35 = arith.constant dense<0.000000e+00> : vector<8x128xf32>
    %94 = tpu.matmul %92, %93, %cst_35 {dimension_numbers = #tpu.dot_dimension_numbers<[1], [0], [0], [1], [0, 0, 1, 1], [], []>} : vector<8x32xbf16>, vector<32x128xbf16>, vector<8x128xf32> -> vector<8x128xf32>
    %c0_36 = arith.constant 0 : index
    %c0_37 = arith.constant 0 : index
    %95 = vector.load %arg4[%c0_36, %c0_37] : memref<1x128xf32, #tpu.memory_space<vmem>>, vector<1x128xf32>
    %96 = vector.broadcast %95 : vector<1x128xf32> to vector<8x128xf32>
    %97 = arith.addf %94, %96 : vector<8x128xf32>
    %98 = arith.negf %97 : vector<8x128xf32>
    %99 = math.exp %98 : vector<8x128xf32>
    %cst_38 = arith.constant 1.000000e+00 : f32
    %100 = vector.broadcast %cst_38 : f32 to vector<8x128xf32>
    %101 = arith.addf %100, %99 : vector<8x128xf32>
    %102 = arith.divf %100, %101 : vector<8x128xf32>
    %c1_i32_39 = arith.constant 1 : i32
    %103 = arith.addi %c1_i32_22, %c1_i32_39 : i32
    %104 = arith.index_cast %103 : i32 to index
    %c0_40 = arith.constant 0 : index
    %c0_41 = arith.constant 0 : index
    %105 = vector.load %arg5[%104, %c0_40, %c0_41] : memref<8x8x128xf32, #tpu.memory_space<vmem>>, vector<1x8x128xf32>
    %106 = vector.shape_cast %105 : vector<1x8x128xf32> to vector<8x128xf32>
    %107 = vector.shape_cast %102 : vector<8x128xf32> to vector<1x8x128xf32>
    tpu.vector_store %arg5[%104, %c0_40, %c0_41], %107 {strides = array<i32>} : memref<8x8x128xf32, #tpu.memory_space<vmem>>, vector<1x8x128xf32>,
    %c2_i32 = arith.constant 2 : i32
    %108 = arith.index_cast %c2_i32 : i32 to index
    %c0_42 = arith.constant 0 : index
    %c0_43 = arith.constant 0 : index
    %109 = vector.load %arg0[%108, %c0_42, %c0_43] : memref<8x8x128xbf16, #tpu.memory_space<vmem>>, vector<1x8x128xbf16>
    %110 = vector.shape_cast %109 : vector<1x8x128xbf16> to vector<8x128xbf16>
    %111 = arith.extf %110 : vector<8x128xbf16> to vector<8x128xf32>
    %112 = arith.mulf %111, %102 : vector<8x128xf32>
    %113 = arith.truncf %112 : vector<8x128xf32> to vector<8x128xbf16>
    %114 = arith.truncf %91 : vector<8x32xf32> to vector<8x32xbf16>
    %115 = tpu.concatenate %113, %114 in 1 : vector<8x128xbf16>, vector<8x32xbf16> -> vector<8x160xbf16>
    %c0_44 = arith.constant 0 : index
    %c0_45 = arith.constant 0 : index
    %116 = vector.load %arg1[%c0_44, %c0_45] : memref<160x128xbf16, #tpu.memory_space<vmem>>, vector<160x128xbf16>
    %cst_46 = arith.constant dense<0.000000e+00> : vector<8x128xf32>
    %117 = tpu.matmul %115, %116, %cst_46 {dimension_numbers = #tpu.dot_dimension_numbers<[1], [0], [0], [1], [0, 0, 1, 1], [], []>} : vector<8x160xbf16>, vector<160x128xbf16>, vector<8x128xf32> -> vector<8x128xf32>
    %c0_47 = arith.constant 0 : index
    %c0_48 = arith.constant 0 : index
    %118 = vector.load %arg2[%c0_47, %c0_48] : memref<1x128xf32, #tpu.memory_space<vmem>>, vector<1x128xf32>
    %119 = vector.broadcast %118 : vector<1x128xf32> to vector<8x128xf32>
    %120 = arith.addf %117, %119 : vector<8x128xf32>
    %121 = vector.extract_strided_slice %120 {offsets = [0, 0], sizes = [8, 32], strides = [1, 1]} : vector<8x128xf32> to vector<8x32xf32>
    %122 = arith.negf %121 : vector<8x32xf32>
    %123 = math.exp %122 : vector<8x32xf32>
    %cst_49 = arith.constant 1.000000e+00 : f32
    %124 = vector.broadcast %cst_49 : f32 to vector<8x32xf32>
    %125 = arith.addf %124, %123 : vector<8x32xf32>
    %126 = arith.divf %124, %125 : vector<8x32xf32>
    %127 = vector.extract_strided_slice %120 {offsets = [0, 32], sizes = [8, 32], strides = [1, 1]} : vector<8x128xf32> to vector<8x32xf32>
    %128 = arith.negf %127 : vector<8x32xf32>
    %129 = math.exp %128 : vector<8x32xf32>
    %cst_50 = arith.constant 1.000000e+00 : f32
    %130 = vector.broadcast %cst_50 : f32 to vector<8x32xf32>
    %131 = arith.addf %130, %129 : vector<8x32xf32>
    %132 = arith.divf %130, %131 : vector<8x32xf32>
    %133 = vector.extract_strided_slice %120 {offsets = [0, 64], sizes = [8, 32], strides = [1, 1]} : vector<8x128xf32> to vector<8x32xf32>
    %134 = vector.extract_strided_slice %120 {offsets = [0, 96], sizes = [8, 32], strides = [1, 1]} : vector<8x128xf32> to vector<8x32xf32>
    %135 = arith.mulf %132, %134 : vector<8x32xf32>
    %136 = arith.addf %133, %135 : vector<8x32xf32>
    %137 = math.tanh %136 : vector<8x32xf32>
    %cst_51 = arith.constant 1.000000e+00 : f32
    %138 = vector.broadcast %cst_51 : f32 to vector<8x32xf32>
    %139 = arith.subf %138, %126 : vector<8x32xf32>
    %140 = arith.mulf %139, %137 : vector<8x32xf32>
    %141 = arith.mulf %126, %91 : vector<8x32xf32>
    %142 = arith.addf %140, %141 : vector<8x32xf32>
    %143 = arith.truncf %142 : vector<8x32xf32> to vector<8x32xbf16>
    %c0_52 = arith.constant 0 : index
    %c0_53 = arith.constant 0 : index
    %144 = vector.load %arg3[%c0_52, %c0_53] : memref<32x128xbf16, #tpu.memory_space<vmem>>, vector<32x128xbf16>
    %cst_54 = arith.constant dense<0.000000e+00> : vector<8x128xf32>
    %145 = tpu.matmul %143, %144, %cst_54 {dimension_numbers = #tpu.dot_dimension_numbers<[1], [0], [0], [1], [0, 0, 1, 1], [], []>} : vector<8x32xbf16>, vector<32x128xbf16>, vector<8x128xf32> -> vector<8x128xf32>
    %c0_55 = arith.constant 0 : index
    %c0_56 = arith.constant 0 : index
    %146 = vector.load %arg4[%c0_55, %c0_56] : memref<1x128xf32, #tpu.memory_space<vmem>>, vector<1x128xf32>
    %147 = vector.broadcast %146 : vector<1x128xf32> to vector<8x128xf32>
    %148 = arith.addf %145, %147 : vector<8x128xf32>
    %149 = arith.negf %148 : vector<8x128xf32>
    %150 = math.exp %149 : vector<8x128xf32>
    %cst_57 = arith.constant 1.000000e+00 : f32
    %151 = vector.broadcast %cst_57 : f32 to vector<8x128xf32>
    %152 = arith.addf %151, %150 : vector<8x128xf32>
    %153 = arith.divf %151, %152 : vector<8x128xf32>
    %c1_i32_58 = arith.constant 1 : i32
    %154 = arith.addi %c2_i32, %c1_i32_58 : i32
    %155 = arith.index_cast %154 : i32 to index
    %c0_59 = arith.constant 0 : index
    %c0_60 = arith.constant 0 : index
    %156 = vector.load %arg5[%155, %c0_59, %c0_60] : memref<8x8x128xf32, #tpu.memory_space<vmem>>, vector<1x8x128xf32>
    %157 = vector.shape_cast %156 : vector<1x8x128xf32> to vector<8x128xf32>
    %158 = vector.shape_cast %153 : vector<8x128xf32> to vector<1x8x128xf32>
    tpu.vector_store %arg5[%155, %c0_59, %c0_60], %158 {strides = array<i32>} : memref<8x8x128xf32, #tpu.memory_space<vmem>>, vector<1x8x128xf32>,
    %c3_i32 = arith.constant 3 : i32
    %159 = arith.index_cast %c3_i32 : i32 to index
    %c0_61 = arith.constant 0 : index
    %c0_62 = arith.constant 0 : index
    %160 = vector.load %arg0[%159, %c0_61, %c0_62] : memref<8x8x128xbf16, #tpu.memory_space<vmem>>, vector<1x8x128xbf16>
    %161 = vector.shape_cast %160 : vector<1x8x128xbf16> to vector<8x128xbf16>
    %162 = arith.extf %161 : vector<8x128xbf16> to vector<8x128xf32>
    %163 = arith.mulf %162, %153 : vector<8x128xf32>
    %164 = arith.truncf %163 : vector<8x128xf32> to vector<8x128xbf16>
    %165 = arith.truncf %142 : vector<8x32xf32> to vector<8x32xbf16>
    %166 = tpu.concatenate %164, %165 in 1 : vector<8x128xbf16>, vector<8x32xbf16> -> vector<8x160xbf16>
    %c0_63 = arith.constant 0 : index
    %c0_64 = arith.constant 0 : index
    %167 = vector.load %arg1[%c0_63, %c0_64] : memref<160x128xbf16, #tpu.memory_space<vmem>>, vector<160x128xbf16>
    %cst_65 = arith.constant dense<0.000000e+00> : vector<8x128xf32>
    %168 = tpu.matmul %166, %167, %cst_65 {dimension_numbers = #tpu.dot_dimension_numbers<[1], [0], [0], [1], [0, 0, 1, 1], [], []>} : vector<8x160xbf16>, vector<160x128xbf16>, vector<8x128xf32> -> vector<8x128xf32>
    %c0_66 = arith.constant 0 : index
    %c0_67 = arith.constant 0 : index
    %169 = vector.load %arg2[%c0_66, %c0_67] : memref<1x128xf32, #tpu.memory_space<vmem>>, vector<1x128xf32>
    %170 = vector.broadcast %169 : vector<1x128xf32> to vector<8x128xf32>
    %171 = arith.addf %168, %170 : vector<8x128xf32>
    %172 = vector.extract_strided_slice %171 {offsets = [0, 0], sizes = [8, 32], strides = [1, 1]} : vector<8x128xf32> to vector<8x32xf32>
    %173 = arith.negf %172 : vector<8x32xf32>
    %174 = math.exp %173 : vector<8x32xf32>
    %cst_68 = arith.constant 1.000000e+00 : f32
    %175 = vector.broadcast %cst_68 : f32 to vector<8x32xf32>
    %176 = arith.addf %175, %174 : vector<8x32xf32>
    %177 = arith.divf %175, %176 : vector<8x32xf32>
    %178 = vector.extract_strided_slice %171 {offsets = [0, 32], sizes = [8, 32], strides = [1, 1]} : vector<8x128xf32> to vector<8x32xf32>
    %179 = arith.negf %178 : vector<8x32xf32>
    %180 = math.exp %179 : vector<8x32xf32>
    %cst_69 = arith.constant 1.000000e+00 : f32
    %181 = vector.broadcast %cst_69 : f32 to vector<8x32xf32>
    %182 = arith.addf %181, %180 : vector<8x32xf32>
    %183 = arith.divf %181, %182 : vector<8x32xf32>
    %184 = vector.extract_strided_slice %171 {offsets = [0, 64], sizes = [8, 32], strides = [1, 1]} : vector<8x128xf32> to vector<8x32xf32>
    %185 = vector.extract_strided_slice %171 {offsets = [0, 96], sizes = [8, 32], strides = [1, 1]} : vector<8x128xf32> to vector<8x32xf32>
    %186 = arith.mulf %183, %185 : vector<8x32xf32>
    %187 = arith.addf %184, %186 : vector<8x32xf32>
    %188 = math.tanh %187 : vector<8x32xf32>
    %cst_70 = arith.constant 1.000000e+00 : f32
    %189 = vector.broadcast %cst_70 : f32 to vector<8x32xf32>
    %190 = arith.subf %189, %177 : vector<8x32xf32>
    %191 = arith.mulf %190, %188 : vector<8x32xf32>
    %192 = arith.mulf %177, %142 : vector<8x32xf32>
    %193 = arith.addf %191, %192 : vector<8x32xf32>
    %194 = arith.truncf %193 : vector<8x32xf32> to vector<8x32xbf16>
    %c0_71 = arith.constant 0 : index
    %c0_72 = arith.constant 0 : index
    %195 = vector.load %arg3[%c0_71, %c0_72] : memref<32x128xbf16, #tpu.memory_space<vmem>>, vector<32x128xbf16>
    %cst_73 = arith.constant dense<0.000000e+00> : vector<8x128xf32>
    %196 = tpu.matmul %194, %195, %cst_73 {dimension_numbers = #tpu.dot_dimension_numbers<[1], [0], [0], [1], [0, 0, 1, 1], [], []>} : vector<8x32xbf16>, vector<32x128xbf16>, vector<8x128xf32> -> vector<8x128xf32>
    %c0_74 = arith.constant 0 : index
    %c0_75 = arith.constant 0 : index
    %197 = vector.load %arg4[%c0_74, %c0_75] : memref<1x128xf32, #tpu.memory_space<vmem>>, vector<1x128xf32>
    %198 = vector.broadcast %197 : vector<1x128xf32> to vector<8x128xf32>
    %199 = arith.addf %196, %198 : vector<8x128xf32>
    %200 = arith.negf %199 : vector<8x128xf32>
    %201 = math.exp %200 : vector<8x128xf32>
    %cst_76 = arith.constant 1.000000e+00 : f32
    %202 = vector.broadcast %cst_76 : f32 to vector<8x128xf32>
    %203 = arith.addf %202, %201 : vector<8x128xf32>
    %204 = arith.divf %202, %203 : vector<8x128xf32>
    %c1_i32_77 = arith.constant 1 : i32
    %205 = arith.addi %c3_i32, %c1_i32_77 : i32
    %206 = arith.index_cast %205 : i32 to index
    %c0_78 = arith.constant 0 : index
    %c0_79 = arith.constant 0 : index
    %207 = vector.load %arg5[%206, %c0_78, %c0_79] : memref<8x8x128xf32, #tpu.memory_space<vmem>>, vector<1x8x128xf32>
    %208 = vector.shape_cast %207 : vector<1x8x128xf32> to vector<8x128xf32>
    %209 = vector.shape_cast %204 : vector<8x128xf32> to vector<1x8x128xf32>
    tpu.vector_store %arg5[%206, %c0_78, %c0_79], %209 {strides = array<i32>} : memref<8x8x128xf32, #tpu.memory_space<vmem>>, vector<1x8x128xf32>,
    %c4_i32 = arith.constant 4 : i32
    %210 = arith.index_cast %c4_i32 : i32 to index
    %c0_80 = arith.constant 0 : index
    %c0_81 = arith.constant 0 : index
    %211 = vector.load %arg0[%210, %c0_80, %c0_81] : memref<8x8x128xbf16, #tpu.memory_space<vmem>>, vector<1x8x128xbf16>
    %212 = vector.shape_cast %211 : vector<1x8x128xbf16> to vector<8x128xbf16>
    %213 = arith.extf %212 : vector<8x128xbf16> to vector<8x128xf32>
    %214 = arith.mulf %213, %204 : vector<8x128xf32>
    %215 = arith.truncf %214 : vector<8x128xf32> to vector<8x128xbf16>
    %216 = arith.truncf %193 : vector<8x32xf32> to vector<8x32xbf16>
    %217 = tpu.concatenate %215, %216 in 1 : vector<8x128xbf16>, vector<8x32xbf16> -> vector<8x160xbf16>
    %c0_82 = arith.constant 0 : index
    %c0_83 = arith.constant 0 : index
    %218 = vector.load %arg1[%c0_82, %c0_83] : memref<160x128xbf16, #tpu.memory_space<vmem>>, vector<160x128xbf16>
    %cst_84 = arith.constant dense<0.000000e+00> : vector<8x128xf32>
    %219 = tpu.matmul %217, %218, %cst_84 {dimension_numbers = #tpu.dot_dimension_numbers<[1], [0], [0], [1], [0, 0, 1, 1], [], []>} : vector<8x160xbf16>, vector<160x128xbf16>, vector<8x128xf32> -> vector<8x128xf32>
    %c0_85 = arith.constant 0 : index
    %c0_86 = arith.constant 0 : index
    %220 = vector.load %arg2[%c0_85, %c0_86] : memref<1x128xf32, #tpu.memory_space<vmem>>, vector<1x128xf32>
    %221 = vector.broadcast %220 : vector<1x128xf32> to vector<8x128xf32>
    %222 = arith.addf %219, %221 : vector<8x128xf32>
    %223 = vector.extract_strided_slice %222 {offsets = [0, 0], sizes = [8, 32], strides = [1, 1]} : vector<8x128xf32> to vector<8x32xf32>
    %224 = arith.negf %223 : vector<8x32xf32>
    %225 = math.exp %224 : vector<8x32xf32>
    %cst_87 = arith.constant 1.000000e+00 : f32
    %226 = vector.broadcast %cst_87 : f32 to vector<8x32xf32>
    %227 = arith.addf %226, %225 : vector<8x32xf32>
    %228 = arith.divf %226, %227 : vector<8x32xf32>
    %229 = vector.extract_strided_slice %222 {offsets = [0, 32], sizes = [8, 32], strides = [1, 1]} : vector<8x128xf32> to vector<8x32xf32>
    %230 = arith.negf %229 : vector<8x32xf32>
    %231 = math.exp %230 : vector<8x32xf32>
    %cst_88 = arith.constant 1.000000e+00 : f32
    %232 = vector.broadcast %cst_88 : f32 to vector<8x32xf32>
    %233 = arith.addf %232, %231 : vector<8x32xf32>
    %234 = arith.divf %232, %233 : vector<8x32xf32>
    %235 = vector.extract_strided_slice %222 {offsets = [0, 64], sizes = [8, 32], strides = [1, 1]} : vector<8x128xf32> to vector<8x32xf32>
    %236 = vector.extract_strided_slice %222 {offsets = [0, 96], sizes = [8, 32], strides = [1, 1]} : vector<8x128xf32> to vector<8x32xf32>
    %237 = arith.mulf %234, %236 : vector<8x32xf32>
    %238 = arith.addf %235, %237 : vector<8x32xf32>
    %239 = math.tanh %238 : vector<8x32xf32>
    %cst_89 = arith.constant 1.000000e+00 : f32
    %240 = vector.broadcast %cst_89 : f32 to vector<8x32xf32>
    %241 = arith.subf %240, %228 : vector<8x32xf32>
    %242 = arith.mulf %241, %239 : vector<8x32xf32>
    %243 = arith.mulf %228, %193 : vector<8x32xf32>
    %244 = arith.addf %242, %243 : vector<8x32xf32>
    %245 = arith.truncf %244 : vector<8x32xf32> to vector<8x32xbf16>
    %c0_90 = arith.constant 0 : index
    %c0_91 = arith.constant 0 : index
    %246 = vector.load %arg3[%c0_90, %c0_91] : memref<32x128xbf16, #tpu.memory_space<vmem>>, vector<32x128xbf16>
    %cst_92 = arith.constant dense<0.000000e+00> : vector<8x128xf32>
    %247 = tpu.matmul %245, %246, %cst_92 {dimension_numbers = #tpu.dot_dimension_numbers<[1], [0], [0], [1], [0, 0, 1, 1], [], []>} : vector<8x32xbf16>, vector<32x128xbf16>, vector<8x128xf32> -> vector<8x128xf32>
    %c0_93 = arith.constant 0 : index
    %c0_94 = arith.constant 0 : index
    %248 = vector.load %arg4[%c0_93, %c0_94] : memref<1x128xf32, #tpu.memory_space<vmem>>, vector<1x128xf32>
    %249 = vector.broadcast %248 : vector<1x128xf32> to vector<8x128xf32>
    %250 = arith.addf %247, %249 : vector<8x128xf32>
    %251 = arith.negf %250 : vector<8x128xf32>
    %252 = math.exp %251 : vector<8x128xf32>
    %cst_95 = arith.constant 1.000000e+00 : f32
    %253 = vector.broadcast %cst_95 : f32 to vector<8x128xf32>
    %254 = arith.addf %253, %252 : vector<8x128xf32>
    %255 = arith.divf %253, %254 : vector<8x128xf32>
    %c1_i32_96 = arith.constant 1 : i32
    %256 = arith.addi %c4_i32, %c1_i32_96 : i32
    %257 = arith.index_cast %256 : i32 to index
    %c0_97 = arith.constant 0 : index
    %c0_98 = arith.constant 0 : index
    %258 = vector.load %arg5[%257, %c0_97, %c0_98] : memref<8x8x128xf32, #tpu.memory_space<vmem>>, vector<1x8x128xf32>
    %259 = vector.shape_cast %258 : vector<1x8x128xf32> to vector<8x128xf32>
    %260 = vector.shape_cast %255 : vector<8x128xf32> to vector<1x8x128xf32>
    tpu.vector_store %arg5[%257, %c0_97, %c0_98], %260 {strides = array<i32>} : memref<8x8x128xf32, #tpu.memory_space<vmem>>, vector<1x8x128xf32>,
    %c5_i32 = arith.constant 5 : i32
    %261 = arith.index_cast %c5_i32 : i32 to index
    %c0_99 = arith.constant 0 : index
    %c0_100 = arith.constant 0 : index
    %262 = vector.load %arg0[%261, %c0_99, %c0_100] : memref<8x8x128xbf16, #tpu.memory_space<vmem>>, vector<1x8x128xbf16>
    %263 = vector.shape_cast %262 : vector<1x8x128xbf16> to vector<8x128xbf16>
    %264 = arith.extf %263 : vector<8x128xbf16> to vector<8x128xf32>
    %265 = arith.mulf %264, %255 : vector<8x128xf32>
    %266 = arith.truncf %265 : vector<8x128xf32> to vector<8x128xbf16>
    %267 = arith.truncf %244 : vector<8x32xf32> to vector<8x32xbf16>
    %268 = tpu.concatenate %266, %267 in 1 : vector<8x128xbf16>, vector<8x32xbf16> -> vector<8x160xbf16>
    %c0_101 = arith.constant 0 : index
    %c0_102 = arith.constant 0 : index
    %269 = vector.load %arg1[%c0_101, %c0_102] : memref<160x128xbf16, #tpu.memory_space<vmem>>, vector<160x128xbf16>
    %cst_103 = arith.constant dense<0.000000e+00> : vector<8x128xf32>
    %270 = tpu.matmul %268, %269, %cst_103 {dimension_numbers = #tpu.dot_dimension_numbers<[1], [0], [0], [1], [0, 0, 1, 1], [], []>} : vector<8x160xbf16>, vector<160x128xbf16>, vector<8x128xf32> -> vector<8x128xf32>
    %c0_104 = arith.constant 0 : index
    %c0_105 = arith.constant 0 : index
    %271 = vector.load %arg2[%c0_104, %c0_105] : memref<1x128xf32, #tpu.memory_space<vmem>>, vector<1x128xf32>
    %272 = vector.broadcast %271 : vector<1x128xf32> to vector<8x128xf32>
    %273 = arith.addf %270, %272 : vector<8x128xf32>
    %274 = vector.extract_strided_slice %273 {offsets = [0, 0], sizes = [8, 32], strides = [1, 1]} : vector<8x128xf32> to vector<8x32xf32>
    %275 = arith.negf %274 : vector<8x32xf32>
    %276 = math.exp %275 : vector<8x32xf32>
    %cst_106 = arith.constant 1.000000e+00 : f32
    %277 = vector.broadcast %cst_106 : f32 to vector<8x32xf32>
    %278 = arith.addf %277, %276 : vector<8x32xf32>
    %279 = arith.divf %277, %278 : vector<8x32xf32>
    %280 = vector.extract_strided_slice %273 {offsets = [0, 32], sizes = [8, 32], strides = [1, 1]} : vector<8x128xf32> to vector<8x32xf32>
    %281 = arith.negf %280 : vector<8x32xf32>
    %282 = math.exp %281 : vector<8x32xf32>
    %cst_107 = arith.constant 1.000000e+00 : f32
    %283 = vector.broadcast %cst_107 : f32 to vector<8x32xf32>
    %284 = arith.addf %283, %282 : vector<8x32xf32>
    %285 = arith.divf %283, %284 : vector<8x32xf32>
    %286 = vector.extract_strided_slice %273 {offsets = [0, 64], sizes = [8, 32], strides = [1, 1]} : vector<8x128xf32> to vector<8x32xf32>
    %287 = vector.extract_strided_slice %273 {offsets = [0, 96], sizes = [8, 32], strides = [1, 1]} : vector<8x128xf32> to vector<8x32xf32>
    %288 = arith.mulf %285, %287 : vector<8x32xf32>
    %289 = arith.addf %286, %288 : vector<8x32xf32>
    %290 = math.tanh %289 : vector<8x32xf32>
    %cst_108 = arith.constant 1.000000e+00 : f32
    %291 = vector.broadcast %cst_108 : f32 to vector<8x32xf32>
    %292 = arith.subf %291, %279 : vector<8x32xf32>
    %293 = arith.mulf %292, %290 : vector<8x32xf32>
    %294 = arith.mulf %279, %244 : vector<8x32xf32>
    %295 = arith.addf %293, %294 : vector<8x32xf32>
    %296 = arith.truncf %295 : vector<8x32xf32> to vector<8x32xbf16>
    %c0_109 = arith.constant 0 : index
    %c0_110 = arith.constant 0 : index
    %297 = vector.load %arg3[%c0_109, %c0_110] : memref<32x128xbf16, #tpu.memory_space<vmem>>, vector<32x128xbf16>
    %cst_111 = arith.constant dense<0.000000e+00> : vector<8x128xf32>
    %298 = tpu.matmul %296, %297, %cst_111 {dimension_numbers = #tpu.dot_dimension_numbers<[1], [0], [0], [1], [0, 0, 1, 1], [], []>} : vector<8x32xbf16>, vector<32x128xbf16>, vector<8x128xf32> -> vector<8x128xf32>
    %c0_112 = arith.constant 0 : index
    %c0_113 = arith.constant 0 : index
    %299 = vector.load %arg4[%c0_112, %c0_113] : memref<1x128xf32, #tpu.memory_space<vmem>>, vector<1x128xf32>
    %300 = vector.broadcast %299 : vector<1x128xf32> to vector<8x128xf32>
    %301 = arith.addf %298, %300 : vector<8x128xf32>
    %302 = arith.negf %301 : vector<8x128xf32>
    %303 = math.exp %302 : vector<8x128xf32>
    %cst_114 = arith.constant 1.000000e+00 : f32
    %304 = vector.broadcast %cst_114 : f32 to vector<8x128xf32>
    %305 = arith.addf %304, %303 : vector<8x128xf32>
    %306 = arith.divf %304, %305 : vector<8x128xf32>
    %c1_i32_115 = arith.constant 1 : i32
    %307 = arith.addi %c5_i32, %c1_i32_115 : i32
    %308 = arith.index_cast %307 : i32 to index
    %c0_116 = arith.constant 0 : index
    %c0_117 = arith.constant 0 : index
    %309 = vector.load %arg5[%308, %c0_116, %c0_117] : memref<8x8x128xf32, #tpu.memory_space<vmem>>, vector<1x8x128xf32>
    %310 = vector.shape_cast %309 : vector<1x8x128xf32> to vector<8x128xf32>
    %311 = vector.shape_cast %306 : vector<8x128xf32> to vector<1x8x128xf32>
    tpu.vector_store %arg5[%308, %c0_116, %c0_117], %311 {strides = array<i32>} : memref<8x8x128xf32, #tpu.memory_space<vmem>>, vector<1x8x128xf32>,
    %c6_i32 = arith.constant 6 : i32
    %312 = arith.index_cast %c6_i32 : i32 to index
    %c0_118 = arith.constant 0 : index
    %c0_119 = arith.constant 0 : index
    %313 = vector.load %arg0[%312, %c0_118, %c0_119] : memref<8x8x128xbf16, #tpu.memory_space<vmem>>, vector<1x8x128xbf16>
    %314 = vector.shape_cast %313 : vector<1x8x128xbf16> to vector<8x128xbf16>
    %315 = arith.extf %314 : vector<8x128xbf16> to vector<8x128xf32>
    %316 = arith.mulf %315, %306 : vector<8x128xf32>
    %317 = arith.truncf %316 : vector<8x128xf32> to vector<8x128xbf16>
    %318 = arith.truncf %295 : vector<8x32xf32> to vector<8x32xbf16>
    %319 = tpu.concatenate %317, %318 in 1 : vector<8x128xbf16>, vector<8x32xbf16> -> vector<8x160xbf16>
    %c0_120 = arith.constant 0 : index
    %c0_121 = arith.constant 0 : index
    %320 = vector.load %arg1[%c0_120, %c0_121] : memref<160x128xbf16, #tpu.memory_space<vmem>>, vector<160x128xbf16>
    %cst_122 = arith.constant dense<0.000000e+00> : vector<8x128xf32>
    %321 = tpu.matmul %319, %320, %cst_122 {dimension_numbers = #tpu.dot_dimension_numbers<[1], [0], [0], [1], [0, 0, 1, 1], [], []>} : vector<8x160xbf16>, vector<160x128xbf16>, vector<8x128xf32> -> vector<8x128xf32>
    %c0_123 = arith.constant 0 : index
    %c0_124 = arith.constant 0 : index
    %322 = vector.load %arg2[%c0_123, %c0_124] : memref<1x128xf32, #tpu.memory_space<vmem>>, vector<1x128xf32>
    %323 = vector.broadcast %322 : vector<1x128xf32> to vector<8x128xf32>
    %324 = arith.addf %321, %323 : vector<8x128xf32>
    %325 = vector.extract_strided_slice %324 {offsets = [0, 0], sizes = [8, 32], strides = [1, 1]} : vector<8x128xf32> to vector<8x32xf32>
    %326 = arith.negf %325 : vector<8x32xf32>
    %327 = math.exp %326 : vector<8x32xf32>
    %cst_125 = arith.constant 1.000000e+00 : f32
    %328 = vector.broadcast %cst_125 : f32 to vector<8x32xf32>
    %329 = arith.addf %328, %327 : vector<8x32xf32>
    %330 = arith.divf %328, %329 : vector<8x32xf32>
    %331 = vector.extract_strided_slice %324 {offsets = [0, 32], sizes = [8, 32], strides = [1, 1]} : vector<8x128xf32> to vector<8x32xf32>
    %332 = arith.negf %331 : vector<8x32xf32>
    %333 = math.exp %332 : vector<8x32xf32>
    %cst_126 = arith.constant 1.000000e+00 : f32
    %334 = vector.broadcast %cst_126 : f32 to vector<8x32xf32>
    %335 = arith.addf %334, %333 : vector<8x32xf32>
    %336 = arith.divf %334, %335 : vector<8x32xf32>
    %337 = vector.extract_strided_slice %324 {offsets = [0, 64], sizes = [8, 32], strides = [1, 1]} : vector<8x128xf32> to vector<8x32xf32>
    %338 = vector.extract_strided_slice %324 {offsets = [0, 96], sizes = [8, 32], strides = [1, 1]} : vector<8x128xf32> to vector<8x32xf32>
    %339 = arith.mulf %336, %338 : vector<8x32xf32>
    %340 = arith.addf %337, %339 : vector<8x32xf32>
    %341 = math.tanh %340 : vector<8x32xf32>
    %cst_127 = arith.constant 1.000000e+00 : f32
    %342 = vector.broadcast %cst_127 : f32 to vector<8x32xf32>
    %343 = arith.subf %342, %330 : vector<8x32xf32>
    %344 = arith.mulf %343, %341 : vector<8x32xf32>
    %345 = arith.mulf %330, %295 : vector<8x32xf32>
    %346 = arith.addf %344, %345 : vector<8x32xf32>
    %347 = arith.truncf %346 : vector<8x32xf32> to vector<8x32xbf16>
    %c0_128 = arith.constant 0 : index
    %c0_129 = arith.constant 0 : index
    %348 = vector.load %arg3[%c0_128, %c0_129] : memref<32x128xbf16, #tpu.memory_space<vmem>>, vector<32x128xbf16>
    %cst_130 = arith.constant dense<0.000000e+00> : vector<8x128xf32>
    %349 = tpu.matmul %347, %348, %cst_130 {dimension_numbers = #tpu.dot_dimension_numbers<[1], [0], [0], [1], [0, 0, 1, 1], [], []>} : vector<8x32xbf16>, vector<32x128xbf16>, vector<8x128xf32> -> vector<8x128xf32>
    %c0_131 = arith.constant 0 : index
    %c0_132 = arith.constant 0 : index
    %350 = vector.load %arg4[%c0_131, %c0_132] : memref<1x128xf32, #tpu.memory_space<vmem>>, vector<1x128xf32>
    %351 = vector.broadcast %350 : vector<1x128xf32> to vector<8x128xf32>
    %352 = arith.addf %349, %351 : vector<8x128xf32>
    %353 = arith.negf %352 : vector<8x128xf32>
    %354 = math.exp %353 : vector<8x128xf32>
    %cst_133 = arith.constant 1.000000e+00 : f32
    %355 = vector.broadcast %cst_133 : f32 to vector<8x128xf32>
    %356 = arith.addf %355, %354 : vector<8x128xf32>
    %357 = arith.divf %355, %356 : vector<8x128xf32>
    %c1_i32_134 = arith.constant 1 : i32
    %358 = arith.addi %c6_i32, %c1_i32_134 : i32
    %359 = arith.index_cast %358 : i32 to index
    %c0_135 = arith.constant 0 : index
    %c0_136 = arith.constant 0 : index
    %360 = vector.load %arg5[%359, %c0_135, %c0_136] : memref<8x8x128xf32, #tpu.memory_space<vmem>>, vector<1x8x128xf32>
    %361 = vector.shape_cast %360 : vector<1x8x128xf32> to vector<8x128xf32>
    %362 = vector.shape_cast %357 : vector<8x128xf32> to vector<1x8x128xf32>
    tpu.vector_store %arg5[%359, %c0_135, %c0_136], %362 {strides = array<i32>} : memref<8x8x128xf32, #tpu.memory_space<vmem>>, vector<1x8x128xf32>,
    %c7_i32 = arith.constant 7 : i32
    return
  }
}

</mosaic_0001>

<llo_original>
// kernel: generator_forward.1
$region0: #{generator_forward.1}
  #allocation0 [shape = 'u32[]', space=smem, size = 0x4, offset = 0x4, fixed_abs, tag = 'smem constant byte address 0x4 - core index']
  #allocation1 [shape = 'u32[72,128]{1,0:T(1,128)}', space=vmem, size = 0x9000, scoped, tag = 'internal scratch']
  %s0 = inlined_call_operand.vmem [shape: bf16[8,8,128], index: 0, kind: input, shape index: {}]
  %s1 = inlined_call_operand.vmem [shape: bf16[160,128], index: 1, kind: input, shape index: {}]
  %s2 = inlined_call_operand.vmem [shape: f32[1,128], index: 2, kind: input, shape index: {}]
  %s3 = inlined_call_operand.vmem [shape: bf16[32,128], index: 3, kind: input, shape index: {}]
  %s4 = inlined_call_operand.vmem [shape: f32[1,128], index: 4, kind: input, shape index: {}]
  %s5 = inlined_call_operand.vmem [shape: f32[8,8,128], index: 5, kind: output, shape index: {}]
  %s6 = sld [smem:[#allocation0]]
  $region30: #{generator_forward.1} parent=0
    _
  %s8 = ssub.s32 1, %s6
  %s9 = scalar_select 0, %s8, %s6
  // Predicated region
  $region2: #{generator_forward.1} parent=0 // pred_check
    _
  $region3: #{generator_forward.1} parent=0 // pred_check_branch
    %11 = sbr.rel (0) target = $region5
  $region4: #{generator_forward.1} parent=0 // pred_region
    _
  $region5: #{generator_forward.1} parent=0 // pred_fallthru
    _
  // Predicated region
  $region6: #{generator_forward.1} parent=0 // pred_check
    _
  $region7: #{generator_forward.1} parent=0 // pred_check_branch
    %13 = sbr.rel (0) target = $region9
  $region8: #{generator_forward.1} parent=0 // pred_region
    _
  $region9: #{generator_forward.1} parent=0 // pred_fallthru
    _
  // Predicated region
  $region10: #{generator_forward.1} parent=0 // pred_check
    _
  $region11: #{generator_forward.1} parent=0 // pred_check_branch
    %15 = sbr.rel (0) target = $region13
  $region12: #{generator_forward.1} parent=0 // pred_region
    _
  $region13: #{generator_forward.1} parent=0 // pred_fallthru
    _
  // Predicated region
  $region14: #{generator_forward.1} parent=0 // pred_check
    _
  $region15: #{generator_forward.1} parent=0 // pred_check_branch
    %17 = sbr.rel (0) target = $region17
  $region16: #{generator_forward.1} parent=0 // pred_region
    _
  $region17: #{generator_forward.1} parent=0 // pred_fallthru
    _
  // Predicated region
  $region18: #{generator_forward.1} parent=0 // pred_check
    _
  $region19: #{generator_forward.1} parent=0 // pred_check_branch
    %19 = sbr.rel (0) target = $region21
  $region20: #{generator_forward.1} parent=0 // pred_region
    _
  $region21: #{generator_forward.1} parent=0 // pred_fallthru
    _
  %21 = vst [vmem:[%s5] sm:$0xff] 1.0
  %v22 = vld [vmem:[%s0] sm:$0xf]
  %v23 = vld [vmem:[%s1] sm:$0xf]
  %v24 = vld [vmem:[%s1 + $0x4] sm:$0xf]
  %v25 = vld [vmem:[%s1 + $0x8] sm:$0xf]
  %v26 = vld [vmem:[%s1 + $0xc] sm:$0xf]
  %v27 = vld [vmem:[%s1 + $0x10] sm:$0xf]
  %v28 = vld [vmem:[%s1 + $0x14] sm:$0xf]
  %v29 = vld [vmem:[%s1 + $0x18] sm:$0xf]
  %v30 = vld [vmem:[%s1 + $0x1c] sm:$0xf]
  %v31 = vld [vmem:[%s1 + $0x20] sm:$0xf]
  %v32 = vld [vmem:[%s1 + $0x24] sm:$0xf]
  %v33 = vld [vmem:[%s1 + $0x28] sm:$0xf]
  %v34 = vld [vmem:[%s1 + $0x2c] sm:$0xf]
  %v35 = vld [vmem:[%s1 + $0x30] sm:$0xf]
  %v36 = vld [vmem:[%s1 + $0x34] sm:$0xf]
  %v37 = vld [vmem:[%s1 + $0x38] sm:$0xf]
  %v38 = vld [vmem:[%s1 + $0x3c] sm:$0xf]
  %v39 = vld [vmem:[%s1 + $0x40] sm:$0xf]
  %v40 = vld [vmem:[%s1 + $0x44] sm:$0xf]
  %v41 = vld [vmem:[%s1 + $0x48] sm:$0xf]
  %v42 = vld [vmem:[%s1 + $0x4c] sm:$0xf]
  %v43 = vld [vmem:[%s2] sm:$0x1]
  %v45 = vperm.slane %v43, 0
  %v67 = vunpack.c.l.b16 %v23
  %v68 = vunpack.c.l.b16 %v24
  %v69 = vunpack.c.l.b16 %v25
  %v70 = vunpack.c.l.b16 %v26
  %v71 = vunpack.c.l.b16 %v27
  %v72 = vunpack.c.l.b16 %v28
  %v73 = vunpack.c.l.b16 %v29
  %v74 = vunpack.c.l.b16 %v30
  %v75 = vunpack.c.l.b16 %v31
  %v76 = vunpack.c.l.b16 %v32
  %v77 = vunpack.c.l.b16 %v33
  %v78 = vunpack.c.l.b16 %v34
  %v79 = vunpack.c.l.b16 %v35
  %v80 = vunpack.c.l.b16 %v36
  %v81 = vunpack.c.l.b16 %v37
  %v82 = vunpack.c.l.b16 %v38
  %v83 = vunpack.c.l.b16 %v39
  %v84 = vunpack.c.l.b16 %v40
  %v85 = vunpack.c.l.b16 %v41
  %v86 = vunpack.c.l.b16 %v42
  %v87 = vpack.c.b16 %v68, %v67
  %v88 = vpack.c.b16 %v70, %v69
  %v89 = vpack.c.b16 %v72, %v71
  %v90 = vpack.c.b16 %v74, %v73
  %v91 = vpack.c.b16 %v76, %v75
  %v92 = vpack.c.b16 %v78, %v77
  %v93 = vpack.c.b16 %v80, %v79
  %v94 = vpack.c.b16 %v82, %v81
  %v95 = vpack.c.b16 %v84, %v83
  %v96 = vpack.c.b16 %v86, %v85
  %vm107 = vcmask 261120
  %v109 = vsel %vm107, 0, 0
  %111 = vmatpush.bf16.msra.mxu0 %v94
  %112 = vmatpush.bf16.msra.mxu0 %v93
  %113 = vmatpush.bf16.msra.mxu0 %v92
  %114 = vmatpush.bf16.msra.mxu0 %v91
  %115 = vmatpush.bf16.msra.mxu0 %v90
  %116 = vmatpush.bf16.msra.mxu0 %v89
  %117 = vmatpush.bf16.msra.mxu0 %v88
  %118 = vmatpush.bf16.msra.mxu0 %v87
  %119 = vmatmul.bf16.gmra.mxu0 %v22
  %v120 = vpop.f32.mrf.mxu0
  %v121 = vadd.f32 %v45, %v120
  %v122 = vpop.f32.mrf.mxu0
  %123 = vdwg.mxu0
  %124 = vmatpush.bf16.msra.mxu0 0
  %125 = vmatpush.bf16.msra.mxu0 0
  %126 = vmatpush.bf16.msra.mxu0 0
  %127 = vmatpush.bf16.msra.mxu0 0
  %128 = vmatpush.bf16.msra.mxu0 0
  %129 = vmatpush.bf16.msra.mxu0 0
  %130 = vmatpush.bf16.msra.mxu0 %v96
  %131 = vmatpush.bf16.msra.mxu0 %v95
  %132 = vmatmul.bf16.gmra.mxu0 %v109
  %v133 = vpop.f32.mrf.mxu0
  %v134 = vadd.f32 %v121, %v133
  %v135 = vpop.f32.mrf.mxu0
  %136 = vdwg.mxu0
  %v137 = vxor.u32 %v134, 2147483648
  %v138 = vmul.f32 %v137, 1.442695
  %v139 = vpow.pop %v138
  %v140 = vadd.f32 %v139, 1.0
  %v141 = vrcp.pop %v140
  %v142 = vmul.f32 %v140, %v141
  %v143 = vsub.f32 1.0, %v142
  %v144 = vmul.f32 %v141, %v143
  %v145 = vadd.f32 %v141, %v144
  %vm146 = vweird.f32 %v140
  %vm147 = vweird.f32 %v141
  %vm148 = vmor %vm146, %vm147
  %v149 = vsel %vm148, %v141, %v145
  %v150 = vand.u32 2147483647, %v140
  %vm151 = vcmp.eq.f32.partialorder %v150, 8.507059e+37
  %v152 = vand.u32 %v140, 2147483648
  %v153 = vor.u32 1.1754944e-38, %v152
  %v154 = vsel %vm151, %v153, %v149
  %v155 = vmul.f32 1.0, %v154
  %157 = vrot.lane.b32.xlu0 %v134, 64
  %v158 = vpop.permute.xlu0 %157
  %v160 = vmul.f32 %v155, %v158
  %162 = vrot.lane.b32.xlu0 %v160, 32
  %v163 = vpop.permute.xlu0 %162
  %v165 = vadd.f32 %v134, %v163
  %v166 = vtanh.pop %v165
  %v167 = vsub.f32 1.0, %v155
  %169 = vrot.lane.b32.xlu0 %v166, 64
  %v170 = vpop.permute.xlu0 %169
  %v172 = vmul.f32 %v167, %v170
  %v173 = vmul.f32 %v155, 0.0
  %v174 = vadd.f32 %v172, %v173
  %v175 = vpack.c.bf16 %v174, %v174
  %v176 = vld [vmem:[%s3] sm:$0xf]
  %v177 = vld [vmem:[%s3 + $0x4] sm:$0xf]
  %v178 = vld [vmem:[%s3 + $0x8] sm:$0xf]
  %v179 = vld [vmem:[%s3 + $0xc] sm:$0xf]
  %v180 = vld [vmem:[%s4] sm:$0x1]
  %v182 = vperm.slane %v180, 0
  %v188 = vunpack.c.l.b16 %v176
  %v189 = vunpack.c.l.b16 %v177
  %v190 = vunpack.c.l.b16 %v178
  %v191 = vunpack.c.l.b16 %v179
  %v192 = vpack.c.b16 %v189, %v188
  %v193 = vpack.c.b16 %v191, %v190
  %v197 = vsel %vm107, %v175, 0
  %199 = vmatpush.bf16.msra.mxu0 0
  %200 = vmatpush.bf16.msra.mxu0 0
  %201 = vmatpush.bf16.msra.mxu0 0
  %202 = vmatpush.bf16.msra.mxu0 0
  %203 = vmatpush.bf16.msra.mxu0 0
  %204 = vmatpush.bf16.msra.mxu0 0
  %205 = vmatpush.bf16.msra.mxu0 %v193
  %206 = vmatpush.bf16.msra.mxu0 %v192
  %207 = vmatmul.bf16.gmra.mxu0 %v197
  %v208 = vpop.f32.mrf.mxu0
  %v209 = vadd.f32 %v182, %v208
  %v210 = vpop.f32.mrf.mxu0
  %211 = vdwg.mxu0
  %v212 = vxor.u32 %v209, 2147483648
  %v213 = vmul.f32 %v212, 1.442695
  %v214 = vpow.pop %v213
  %v215 = vadd.f32 %v214, 1.0
  %v216 = vrcp.pop %v215
  %v217 = vmul.f32 %v215, %v216
  %v218 = vsub.f32 1.0, %v217
  %v219 = vmul.f32 %v216, %v218
  %v220 = vadd.f32 %v216, %v219
  %vm221 = vweird.f32 %v215
  %vm222 = vweird.f32 %v216
  %vm223 = vmor %vm221, %vm222
  %v224 = vsel %vm223, %v216, %v220
  %v225 = vand.u32 2147483647, %v215
  %vm226 = vcmp.eq.f32.partialorder %v225, 8.507059e+37
  %v227 = vand.u32 %v215, 2147483648
  %v228 = vor.u32 1.1754944e-38, %v227
  %v229 = vsel %vm226, %v228, %v224
  %v230 = vmul.f32 1.0, %v229
  %s231 = scalar_lea.vmem %s5, 8
  %232 = vst [vmem:[%s231] sm:$0xff] %v230
  %s233 = scalar_lea.vmem %s0, 4
  %v234 = vld [vmem:[%s233] sm:$0xf]
  %v235 = vunpack.c.l.bf16 %v234
  %v236 = vmul.f32 %v235, %v230
  %v237 = vpack.c.bf16 %v236, %v236
  %v238 = vld [vmem:[%s1] sm:$0xf]
  %v239 = vld [vmem:[%s1 + $0x4] sm:$0xf]
  %v240 = vld [vmem:[%s1 + $0x8] sm:$0xf]
  %v241 = vld [vmem:[%s1 + $0xc] sm:$0xf]
  %v242 = vld [vmem:[%s1 + $0x10] sm:$0xf]
  %v243 = vld [vmem:[%s1 + $0x14] sm:$0xf]
  %v244 = vld [vmem:[%s1 + $0x18] sm:$0xf]
  %v245 = vld [vmem:[%s1 + $0x1c] sm:$0xf]
  %v246 = vld [vmem:[%s1 + $0x20] sm:$0xf]
  %v247 = vld [vmem:[%s1 + $0x24] sm:$0xf]
  %v248 = vld [vmem:[%s1 + $0x28] sm:$0xf]
  %v249 = vld [vmem:[%s1 + $0x2c] sm:$0xf]
  %v250 = vld [vmem:[%s1 + $0x30] sm:$0xf]
  %v251 = vld [vmem:[%s1 + $0x34] sm:$0xf]
  %v252 = vld [vmem:[%s1 + $0x38] sm:$0xf]
  %v253 = vld [vmem:[%s1 + $0x3c] sm:$0xf]
  %v254 = vld [vmem:[%s1 + $0x40] sm:$0xf]
  %v255 = vld [vmem:[%s1 + $0x44] sm:$0xf]
  %v256 = vld [vmem:[%s1 + $0x48] sm:$0xf]
  %v257 = vld [vmem:[%s1 + $0x4c] sm:$0xf]
  %v258 = vld [vmem:[%s2] sm:$0x1]
  %v260 = vperm.slane %v258, 0
  %v282 = vunpack.c.l.b16 %v238
  %v283 = vunpack.c.l.b16 %v239
  %v284 = vunpack.c.l.b16 %v240
  %v285 = vunpack.c.l.b16 %v241
  %v286 = vunpack.c.l.b16 %v242
  %v287 = vunpack.c.l.b16 %v243
  %v288 = vunpack.c.l.b16 %v244
  %v289 = vunpack.c.l.b16 %v245
  %v290 = vunpack.c.l.b16 %v246
  %v291 = vunpack.c.l.b16 %v247
  %v292 = vunpack.c.l.b16 %v248
  %v293 = vunpack.c.l.b16 %v249
  %v294 = vunpack.c.l.b16 %v250
  %v295 = vunpack.c.l.b16 %v251
  %v296 = vunpack.c.l.b16 %v252
  %v297 = vunpack.c.l.b16 %v253
  %v298 = vunpack.c.l.b16 %v254
  %v299 = vunpack.c.l.b16 %v255
  %v300 = vunpack.c.l.b16 %v256
  %v301 = vunpack.c.l.b16 %v257
  %v302 = vpack.c.b16 %v283, %v282
  %v303 = vpack.c.b16 %v285, %v284
  %v304 = vpack.c.b16 %v287, %v286
  %v305 = vpack.c.b16 %v289, %v288
  %v306 = vpack.c.b16 %v291, %v290
  %v307 = vpack.c.b16 %v293, %v292
  %v308 = vpack.c.b16 %v295, %v294
  %v309 = vpack.c.b16 %v297, %v296
  %v310 = vpack.c.b16 %v299, %v298
  %v311 = vpack.c.b16 %v301, %v300
  %322 = vmatpush.bf16.msra.mxu0 %v309
  %323 = vmatpush.bf16.msra.mxu0 %v308
  %324 = vmatpush.bf16.msra.mxu0 %v307
  %325 = vmatpush.bf16.msra.mxu0 %v306
  %326 = vmatpush.bf16.msra.mxu0 %v305
  %327 = vmatpush.bf16.msra.mxu0 %v304
  %328 = vmatpush.bf16.msra.mxu0 %v303
  %329 = vmatpush.bf16.msra.mxu0 %v302
  %330 = vmatmul.bf16.gmra.mxu0 %v237
  %v331 = vpop.f32.mrf.mxu0
  %v332 = vadd.f32 %v260, %v331
  %v333 = vpop.f32.mrf.mxu0
  %334 = vdwg.mxu0
  %335 = vmatpush.bf16.msra.mxu0 0
  %336 = vmatpush.bf16.msra.mxu0 0
  %337 = vmatpush.bf16.msra.mxu0 0
  %338 = vmatpush.bf16.msra.mxu0 0
  %339 = vmatpush.bf16.msra.mxu0 0
  %340 = vmatpush.bf16.msra.mxu0 0
  %341 = vmatpush.bf16.msra.mxu0 %v311
  %342 = vmatpush.bf16.msra.mxu0 %v310
  %343 = vmatmul.bf16.gmra.mxu0 %v197
  %v344 = vpop.f32.mrf.mxu0
  %v345 = vadd.f32 %v332, %v344
  %v346 = vpop.f32.mrf.mxu0
  %347 = vdwg.mxu0
  %v348 = vxor.u32 %v345, 2147483648
  %v349 = vmul.f32 %v348, 1.442695
  %v350 = vpow.pop %v349
  %v351 = vadd.f32 %v350, 1.0
  %v352 = vrcp.pop %v351
  %v353 = vmul.f32 %v351, %v352
  %v354 = vsub.f32 1.0, %v353
  %v355 = vmul.f32 %v352, %v354
  %v356 = vadd.f32 %v352, %v355
  %vm357 = vweird.f32 %v351
  %vm358 = vweird.f32 %v352
  %vm359 = vmor %vm357, %vm358
  %v360 = vsel %vm359, %v352, %v356
  %v361 = vand.u32 2147483647, %v351
  %vm362 = vcmp.eq.f32.partialorder %v361, 8.507059e+37
  %v363 = vand.u32 %v351, 2147483648
  %v364 = vor.u32 1.1754944e-38, %v363
  %v365 = vsel %vm362, %v364, %v360
  %v366 = vmul.f32 1.0, %v365
  %368 = vrot.lane.b32.xlu0 %v345, 64
  %v369 = vpop.permute.xlu0 %368
  %v371 = vmul.f32 %v366, %v369
  %373 = vrot.lane.b32.xlu0 %v371, 32
  %v374 = vpop.permute.xlu0 %373
  %v376 = vadd.f32 %v345, %v374
  %v377 = vtanh.pop %v376
  %v378 = vsub.f32 1.0, %v366
  %380 = vrot.lane.b32.xlu0 %v377, 64
  %v381 = vpop.permute.xlu0 %380
  %v383 = vmul.f32 %v378, %v381
  %v384 = vmul.f32 %v366, %v174
  %v385 = vadd.f32 %v383, %v384
  %v386 = vpack.c.bf16 %v385, %v385
  %v387 = vld [vmem:[%s3] sm:$0xf]
  %v388 = vld [vmem:[%s3 + $0x4] sm:$0xf]
  %v389 = vld [vmem:[%s3 + $0x8] sm:$0xf]
  %v390 = vld [vmem:[%s3 + $0xc] sm:$0xf]
  %v391 = vld [vmem:[%s4] sm:$0x1]
  %v393 = vperm.slane %v391, 0
  %v399 = vunpack.c.l.b16 %v387
  %v400 = vunpack.c.l.b16 %v388
  %v401 = vunpack.c.l.b16 %v389
  %v402 = vunpack.c.l.b16 %v390
  %v403 = vpack.c.b16 %v400, %v399
  %v404 = vpack.c.b16 %v402, %v401
  %v408 = vsel %vm107, %v386, 0
  %410 = vmatpush.bf16.msra.mxu0 0
  %411 = vmatpush.bf16.msra.mxu0 0
  %412 = vmatpush.bf16.msra.mxu0 0
  %413 = vmatpush.bf16.msra.mxu0 0
  %414 = vmatpush.bf16.msra.mxu0 0
  %415 = vmatpush.bf16.msra.mxu0 0
  %416 = vmatpush.bf16.msra.mxu0 %v404
  %417 = vmatpush.bf16.msra.mxu0 %v403
  %418 = vmatmul.bf16.gmra.mxu0 %v408
  %v419 = vpop.f32.mrf.mxu0
  %v420 = vadd.f32 %v393, %v419
  %v421 = vpop.f32.mrf.mxu0
  %422 = vdwg.mxu0
  %v423 = vxor.u32 %v420, 2147483648
  %v424 = vmul.f32 %v423, 1.442695
  %v425 = vpow.pop %v424
  %v426 = vadd.f32 %v425, 1.0
  %v427 = vrcp.pop %v426
  %v428 = vmul.f32 %v426, %v427
  %v429 = vsub.f32 1.0, %v428
  %v430 = vmul.f32 %v427, %v429
  %v431 = vadd.f32 %v427, %v430
  %vm432 = vweird.f32 %v426
  %vm433 = vweird.f32 %v427
  %vm434 = vmor %vm432, %vm433
  %v435 = vsel %vm434, %v427, %v431
  %v436 = vand.u32 2147483647, %v426
  %vm437 = vcmp.eq.f32.partialorder %v436, 8.507059e+37
  %v438 = vand.u32 %v426, 2147483648
  %v439 = vor.u32 1.1754944e-38, %v438
  %v440 = vsel %vm437, %v439, %v435
  %v441 = vmul.f32 1.0, %v440
  %s442 = scalar_lea.vmem %s5, 16
  %443 = vst [vmem:[%s442] sm:$0xff] %v441
  %s444 = scalar_lea.vmem %s0, 8
  %v445 = vld [vmem:[%s444] sm:$0xf]
  %v446 = vunpack.c.l.bf16 %v445
  %v447 = vmul.f32 %v446, %v441
  %v448 = vpack.c.bf16 %v447, %v447
  %v449 = vld [vmem:[%s1] sm:$0xf]
  %v450 = vld [vmem:[%s1 + $0x4] sm:$0xf]
  %v451 = vld [vmem:[%s1 + $0x8] sm:$0xf]
  %v452 = vld [vmem:[%s1 + $0xc] sm:$0xf]
  %v453 = vld [vmem:[%s1 + $0x10] sm:$0xf]
  %v454 = vld [vmem:[%s1 + $0x14] sm:$0xf]
  %v455 = vld [vmem:[%s1 + $0x18] sm:$0xf]
  %v456 = vld [vmem:[%s1 + $0x1c] sm:$0xf]
  %v457 = vld [vmem:[%s1 + $0x20] sm:$0xf]
  %v458 = vld [vmem:[%s1 + $0x24] sm:$0xf]
  %v459 = vld [vmem:[%s1 + $0x28] sm:$0xf]
  %v460 = vld [vmem:[%s1 + $0x2c] sm:$0xf]
  %v461 = vld [vmem:[%s1 + $0x30] sm:$0xf]
  %v462 = vld [vmem:[%s1 + $0x34] sm:$0xf]
  %v463 = vld [vmem:[%s1 + $0x38] sm:$0xf]
  %v464 = vld [vmem:[%s1 + $0x3c] sm:$0xf]
  %v465 = vld [vmem:[%s1 + $0x40] sm:$0xf]
  %v466 = vld [vmem:[%s1 + $0x44] sm:$0xf]
  %v467 = vld [vmem:[%s1 + $0x48] sm:$0xf]
  %v468 = vld [vmem:[%s1 + $0x4c] sm:$0xf]
  %v469 = vld [vmem:[%s2] sm:$0x1]
  %v471 = vperm.slane %v469, 0
  %v493 = vunpack.c.l.b16 %v449
  %v494 = vunpack.c.l.b16 %v450
  %v495 = vunpack.c.l.b16 %v451
  %v496 = vunpack.c.l.b16 %v452
  %v497 = vunpack.c.l.b16 %v453
  %v498 = vunpack.c.l.b16 %v454
  %v499 = vunpack.c.l.b16 %v455
  %v500 = vunpack.c.l.b16 %v456
  %v501 = vunpack.c.l.b16 %v457
  %v502 = vunpack.c.l.b16 %v458
  %v503 = vunpack.c.l.b16 %v459
  %v504 = vunpack.c.l.b16 %v460
  %v505 = vunpack.c.l.b16 %v461
  %v506 = vunpack.c.l.b16 %v462
  %v507 = vunpack.c.l.b16 %v463
  %v508 = vunpack.c.l.b16 %v464
  %v509 = vunpack.c.l.b16 %v465
  %v510 = vunpack.c.l.b16 %v466
  %v511 = vunpack.c.l.b16 %v467
  %v512 = vunpack.c.l.b16 %v468
  %v513 = vpack.c.b16 %v494, %v493
  %v514 = vpack.c.b16 %v496, %v495
  %v515 = vpack.c.b16 %v498, %v497
  %v516 = vpack.c.b16 %v500, %v499
  %v517 = vpack.c.b16 %v502, %v501
  %v518 = vpack.c.b16 %v504, %v503
  %v519 = vpack.c.b16 %v506, %v505
  %v520 = vpack.c.b16 %v508, %v507
  %v521 = vpack.c.b16 %v510, %v509
  %v522 = vpack.c.b16 %v512, %v511
  %533 = vmatpush.bf16.msra.mxu0 %v520
  %534 = vmatpush.bf16.msra.mxu0 %v519
  %535 = vmatpush.bf16.msra.mxu0 %v518
  %536 = vmatpush.bf16.msra.mxu0 %v517
  %537 = vmatpush.bf16.msra.mxu0 %v516
  %538 = vmatpush.bf16.msra.mxu0 %v515
  %539 = vmatpush.bf16.msra.mxu0 %v514
  %540 = vmatpush.bf16.msra.mxu0 %v513
  %541 = vmatmul.bf16.gmra.mxu0 %v448
  %v542 = vpop.f32.mrf.mxu0
  %v543 = vadd.f32 %v471, %v542
  %v544 = vpop.f32.mrf.mxu0
  %545 = vdwg.mxu0
  %546 = vmatpush.bf16.msra.mxu0 0
  %547 = vmatpush.bf16.msra.mxu0 0
  %548 = vmatpush.bf16.msra.mxu0 0
  %549 = vmatpush.bf16.msra.mxu0 0
  %550 = vmatpush.bf16.msra.mxu0 0
  %551 = vmatpush.bf16.msra.mxu0 0
  %552 = vmatpush.bf16.msra.mxu0 %v522
  %553 = vmatpush.bf16.msra.mxu0 %v521
  %554 = vmatmul.bf16.gmra.mxu0 %v408
  %v555 = vpop.f32.mrf.mxu0
  %v556 = vadd.f32 %v543, %v555
  %v557 = vpop.f32.mrf.mxu0
  %558 = vdwg.mxu0
  %v559 = vxor.u32 %v556, 2147483648
  %v560 = vmul.f32 %v559, 1.442695
  %v561 = vpow.pop %v560
  %v562 = vadd.f32 %v561, 1.0
  %v563 = vrcp.pop %v562
  %v564 = vmul.f32 %v562, %v563
  %v565 = vsub.f32 1.0, %v564
  %v566 = vmul.f32 %v563, %v565
  %v567 = vadd.f32 %v563, %v566
  %vm568 = vweird.f32 %v562
  %vm569 = vweird.f32 %v563
  %vm570 = vmor %vm568, %vm569
  %v571 = vsel %vm570, %v563, %v567
  %v572 = vand.u32 2147483647, %v562
  %vm573 = vcmp.eq.f32.partialorder %v572, 8.507059e+37
  %v574 = vand.u32 %v562, 2147483648
  %v575 = vor.u32 1.1754944e-38, %v574
  %v576 = vsel %vm573, %v575, %v571
  %v577 = vmul.f32 1.0, %v576
  %579 = vrot.lane.b32.xlu0 %v556, 64
  %v580 = vpop.permute.xlu0 %579
  %v582 = vmul.f32 %v577, %v580
  %584 = vrot.lane.b32.xlu0 %v582, 32
  %v585 = vpop.permute.xlu0 %584
  %v587 = vadd.f32 %v556, %v585
  %v588 = vtanh.pop %v587
  %v589 = vsub.f32 1.0, %v577
  %591 = vrot.lane.b32.xlu0 %v588, 64
  %v592 = vpop.permute.xlu0 %591
  %v594 = vmul.f32 %v589, %v592
  %v595 = vmul.f32 %v577, %v385
  %v596 = vadd.f32 %v594, %v595
  %v597 = vpack.c.bf16 %v596, %v596
  %v598 = vld [vmem:[%s3] sm:$0xf]
  %v599 = vld [vmem:[%s3 + $0x4] sm:$0xf]
  %v600 = vld [vmem:[%s3 + $0x8] sm:$0xf]
  %v601 = vld [vmem:[%s3 + $0xc] sm:$0xf]
  %v602 = vld [vmem:[%s4] sm:$0x1]
  %v604 = vperm.slane %v602, 0
  %v610 = vunpack.c.l.b16 %v598
  %v611 = vunpack.c.l.b16 %v599
  %v612 = vunpack.c.l.b16 %v600
  %v613 = vunpack.c.l.b16 %v601
  %v614 = vpack.c.b16 %v611, %v610
  %v615 = vpack.c.b16 %v613, %v612
  %v619 = vsel %vm107, %v597, 0
  %621 = vmatpush.bf16.msra.mxu0 0
  %622 = vmatpush.bf16.msra.mxu0 0
  %623 = vmatpush.bf16.msra.mxu0 0
  %624 = vmatpush.bf16.msra.mxu0 0
  %625 = vmatpush.bf16.msra.mxu0 0
  %626 = vmatpush.bf16.msra.mxu0 0
  %627 = vmatpush.bf16.msra.mxu0 %v615
  %628 = vmatpush.bf16.msra.mxu0 %v614
  %629 = vmatmul.bf16.gmra.mxu0 %v619
  %v630 = vpop.f32.mrf.mxu0
  %v631 = vadd.f32 %v604, %v630
  %v632 = vpop.f32.mrf.mxu0
  %633 = vdwg.mxu0
  %v634 = vxor.u32 %v631, 2147483648
  %v635 = vmul.f32 %v634, 1.442695
  %v636 = vpow.pop %v635
  %v637 = vadd.f32 %v636, 1.0
  %v638 = vrcp.pop %v637
  %v639 = vmul.f32 %v637, %v638
  %v640 = vsub.f32 1.0, %v639
  %v641 = vmul.f32 %v638, %v640
  %v642 = vadd.f32 %v638, %v641
  %vm643 = vweird.f32 %v637
  %vm644 = vweird.f32 %v638
  %vm645 = vmor %vm643, %vm644
  %v646 = vsel %vm645, %v638, %v642
  %v647 = vand.u32 2147483647, %v637
  %vm648 = vcmp.eq.f32.partialorder %v647, 8.507059e+37
  %v649 = vand.u32 %v637, 2147483648
  %v650 = vor.u32 1.1754944e-38, %v649
  %v651 = vsel %vm648, %v650, %v646
  %v652 = vmul.f32 1.0, %v651
  %s653 = scalar_lea.vmem %s5, 24
  %654 = vst [vmem:[%s653] sm:$0xff] %v652
  %s655 = scalar_lea.vmem %s0, 12
  %v656 = vld [vmem:[%s655] sm:$0xf]
  %v657 = vunpack.c.l.bf16 %v656
  %v658 = vmul.f32 %v657, %v652
  %v659 = vpack.c.bf16 %v658, %v658
  %v660 = vld [vmem:[%s1] sm:$0xf]
  %v661 = vld [vmem:[%s1 + $0x4] sm:$0xf]
  %v662 = vld [vmem:[%s1 + $0x8] sm:$0xf]
  %v663 = vld [vmem:[%s1 + $0xc] sm:$0xf]
  %v664 = vld [vmem:[%s1 + $0x10] sm:$0xf]
  %v665 = vld [vmem:[%s1 + $0x14] sm:$0xf]
  %v666 = vld [vmem:[%s1 + $0x18] sm:$0xf]
  %v667 = vld [vmem:[%s1 + $0x1c] sm:$0xf]
  %v668 = vld [vmem:[%s1 + $0x20] sm:$0xf]
  %v669 = vld [vmem:[%s1 + $0x24] sm:$0xf]
  %v670 = vld [vmem:[%s1 + $0x28] sm:$0xf]
  %v671 = vld [vmem:[%s1 + $0x2c] sm:$0xf]
  %v672 = vld [vmem:[%s1 + $0x30] sm:$0xf]
  %v673 = vld [vmem:[%s1 + $0x34] sm:$0xf]
  %v674 = vld [vmem:[%s1 + $0x38] sm:$0xf]
  %v675 = vld [vmem:[%s1 + $0x3c] sm:$0xf]
  %v676 = vld [vmem:[%s1 + $0x40] sm:$0xf]
  %v677 = vld [vmem:[%s1 + $0x44] sm:$0xf]
  %v678 = vld [vmem:[%s1 + $0x48] sm:$0xf]
  %v679 = vld [vmem:[%s1 + $0x4c] sm:$0xf]
  %v680 = vld [vmem:[%s2] sm:$0x1]
  %v682 = vperm.slane %v680, 0
  %v704 = vunpack.c.l.b16 %v660
  %v705 = vunpack.c.l.b16 %v661
  %v706 = vunpack.c.l.b16 %v662
  %v707 = vunpack.c.l.b16 %v663
  %v708 = vunpack.c.l.b16 %v664
  %v709 = vunpack.c.l.b16 %v665
  %v710 = vunpack.c.l.b16 %v666
  %v711 = vunpack.c.l.b16 %v667
  %v712 = vunpack.c.l.b16 %v668
  %v713 = vunpack.c.l.b16 %v669
  %v714 = vunpack.c.l.b16 %v670
  %v715 = vunpack.c.l.b16 %v671
  %v716 = vunpack.c.l.b16 %v672
  %v717 = vunpack.c.l.b16 %v673
  %v718 = vunpack.c.l.b16 %v674
  %v719 = vunpack.c.l.b16 %v675
  %v720 = vunpack.c.l.b16 %v676
  %v721 = vunpack.c.l.b16 %v677
  %v722 = vunpack.c.l.b16 %v678
  %v723 = vunpack.c.l.b16 %v679
  %v724 = vpack.c.b16 %v705, %v704
  %v725 = vpack.c.b16 %v707, %v706
  %v726 = vpack.c.b16 %v709, %v708
  %v727 = vpack.c.b16 %v711, %v710
  %v728 = vpack.c.b16 %v713, %v712
  %v729 = vpack.c.b16 %v715, %v714
  %v730 = vpack.c.b16 %v717, %v716
  %v731 = vpack.c.b16 %v719, %v718
  %v732 = vpack.c.b16 %v721, %v720
  %v733 = vpack.c.b16 %v723, %v722
  %744 = vmatpush.bf16.msra.mxu0 %v731
  %745 = vmatpush.bf16.msra.mxu0 %v730
  %746 = vmatpush.bf16.msra.mxu0 %v729
  %747 = vmatpush.bf16.msra.mxu0 %v728
  %748 = vmatpush.bf16.msra.mxu0 %v727
  %749 = vmatpush.bf16.msra.mxu0 %v726
  %750 = vmatpush.bf16.msra.mxu0 %v725
  %751 = vmatpush.bf16.msra.mxu0 %v724
  %752 = vmatmul.bf16.gmra.mxu0 %v659
  %v753 = vpop.f32.mrf.mxu0
  %v754 = vadd.f32 %v682, %v753
  %v755 = vpop.f32.mrf.mxu0
  %756 = vdwg.mxu0
  %757 = vmatpush.bf16.msra.mxu0 0
  %758 = vmatpush.bf16.msra.mxu0 0
  %759 = vmatpush.bf16.msra.mxu0 0
  %760 = vmatpush.bf16.msra.mxu0 0
  %761 = vmatpush.bf16.msra.mxu0 0
  %762 = vmatpush.bf16.msra.mxu0 0
  %763 = vmatpush.bf16.msra.mxu0 %v733
  %764 = vmatpush.bf16.msra.mxu0 %v732
  %765 = vmatmul.bf16.gmra.mxu0 %v619
  %v766 = vpop.f32.mrf.mxu0
  %v767 = vadd.f32 %v754, %v766
  %v768 = vpop.f32.mrf.mxu0
  %769 = vdwg.mxu0
  %v770 = vxor.u32 %v767, 2147483648
  %v771 = vmul.f32 %v770, 1.442695
  %v772 = vpow.pop %v771
  %v773 = vadd.f32 %v772, 1.0
  %v774 = vrcp.pop %v773
  %v775 = vmul.f32 %v773, %v774
  %v776 = vsub.f32 1.0, %v775
  %v777 = vmul.f32 %v774, %v776
  %v778 = vadd.f32 %v774, %v777
  %vm779 = vweird.f32 %v773
  %vm780 = vweird.f32 %v774
  %vm781 = vmor %vm779, %vm780
  %v782 = vsel %vm781, %v774, %v778
  %v783 = vand.u32 2147483647, %v773
  %vm784 = vcmp.eq.f32.partialorder %v783, 8.507059e+37
  %v785 = vand.u32 %v773, 2147483648
  %v786 = vor.u32 1.1754944e-38, %v785
  %v787 = vsel %vm784, %v786, %v782
  %v788 = vmul.f32 1.0, %v787
  %790 = vrot.lane.b32.xlu0 %v767, 64
  %v791 = vpop.permute.xlu0 %790
  %v793 = vmul.f32 %v788, %v791
  %795 = vrot.lane.b32.xlu0 %v793, 32
  %v796 = vpop.permute.xlu0 %795
  %v798 = vadd.f32 %v767, %v796
  %v799 = vtanh.pop %v798
  %v800 = vsub.f32 1.0, %v788
  %802 = vrot.lane.b32.xlu0 %v799, 64
  %v803 = vpop.permute.xlu0 %802
  %v805 = vmul.f32 %v800, %v803
  %v806 = vmul.f32 %v788, %v596
  %v807 = vadd.f32 %v805, %v806
  %v808 = vpack.c.bf16 %v807, %v807
  %v809 = vld [vmem:[%s3] sm:$0xf]
  %v810 = vld [vmem:[%s3 + $0x4] sm:$0xf]
  %v811 = vld [vmem:[%s3 + $0x8] sm:$0xf]
  %v812 = vld [vmem:[%s3 + $0xc] sm:$0xf]
  %v813 = vld [vmem:[%s4] sm:$0x1]
  %v815 = vperm.slane %v813, 0
  %v821 = vunpack.c.l.b16 %v809
  %v822 = vunpack.c.l.b16 %v810
  %v823 = vunpack.c.l.b16 %v811
  %v824 = vunpack.c.l.b16 %v812
  %v825 = vpack.c.b16 %v822, %v821
  %v826 = vpack.c.b16 %v824, %v823
  %v830 = vsel %vm107, %v808, 0
  %832 = vmatpush.bf16.msra.mxu0 0
  %833 = vmatpush.bf16.msra.mxu0 0
  %834 = vmatpush.bf16.msra.mxu0 0
  %835 = vmatpush.bf16.msra.mxu0 0
  %836 = vmatpush.bf16.msra.mxu0 0
  %837 = vmatpush.bf16.msra.mxu0 0
  %838 = vmatpush.bf16.msra.mxu0 %v826
  %839 = vmatpush.bf16.msra.mxu0 %v825
  %840 = vmatmul.bf16.gmra.mxu0 %v830
  %v841 = vpop.f32.mrf.mxu0
  %v842 = vadd.f32 %v815, %v841
  %v843 = vpop.f32.mrf.mxu0
  %844 = vdwg.mxu0
  %v845 = vxor.u32 %v842, 2147483648
  %v846 = vmul.f32 %v845, 1.442695
  %v847 = vpow.pop %v846
  %v848 = vadd.f32 %v847, 1.0
  %v849 = vrcp.pop %v848
  %v850 = vmul.f32 %v848, %v849
  %v851 = vsub.f32 1.0, %v850
  %v852 = vmul.f32 %v849, %v851
  %v853 = vadd.f32 %v849, %v852
  %vm854 = vweird.f32 %v848
  %vm855 = vweird.f32 %v849
  %vm856 = vmor %vm854, %vm855
  %v857 = vsel %vm856, %v849, %v853
  %v858 = vand.u32 2147483647, %v848
  %vm859 = vcmp.eq.f32.partialorder %v858, 8.507059e+37
  %v860 = vand.u32 %v848, 2147483648
  %v861 = vor.u32 1.1754944e-38, %v860
  %v862 = vsel %vm859, %v861, %v857
  %v863 = vmul.f32 1.0, %v862
  %s864 = scalar_lea.vmem %s5, 32
  %865 = vst [vmem:[%s864] sm:$0xff] %v863
  %s866 = scalar_lea.vmem %s0, 16
  %v867 = vld [vmem:[%s866] sm:$0xf]
  %v868 = vunpack.c.l.bf16 %v867
  %v869 = vmul.f32 %v868, %v863
  %v870 = vpack.c.bf16 %v869, %v869
  %v871 = vld [vmem:[%s1] sm:$0xf]
  %v872 = vld [vmem:[%s1 + $0x4] sm:$0xf]
  %v873 = vld [vmem:[%s1 + $0x8] sm:$0xf]
  %v874 = vld [vmem:[%s1 + $0xc] sm:$0xf]
  %v875 = vld [vmem:[%s1 + $0x10] sm:$0xf]
  %v876 = vld [vmem:[%s1 + $0x14] sm:$0xf]
  %v877 = vld [vmem:[%s1 + $0x18] sm:$0xf]
  %v878 = vld [vmem:[%s1 + $0x1c] sm:$0xf]
  %v879 = vld [vmem:[%s1 + $0x20] sm:$0xf]
  %v880 = vld [vmem:[%s1 + $0x24] sm:$0xf]
  %v881 = vld [vmem:[%s1 + $0x28] sm:$0xf]
  %v882 = vld [vmem:[%s1 + $0x2c] sm:$0xf]
  %v883 = vld [vmem:[%s1 + $0x30] sm:$0xf]
  %v884 = vld [vmem:[%s1 + $0x34] sm:$0xf]
  %v885 = vld [vmem:[%s1 + $0x38] sm:$0xf]
  %v886 = vld [vmem:[%s1 + $0x3c] sm:$0xf]
  %v887 = vld [vmem:[%s1 + $0x40] sm:$0xf]
  %v888 = vld [vmem:[%s1 + $0x44] sm:$0xf]
  %v889 = vld [vmem:[%s1 + $0x48] sm:$0xf]
  %v890 = vld [vmem:[%s1 + $0x4c] sm:$0xf]
  %v891 = vld [vmem:[%s2] sm:$0x1]
  %v893 = vperm.slane %v891, 0
  %v915 = vunpack.c.l.b16 %v871
  %v916 = vunpack.c.l.b16 %v872
  %v917 = vunpack.c.l.b16 %v873
  %v918 = vunpack.c.l.b16 %v874
  %v919 = vunpack.c.l.b16 %v875
  %v920 = vunpack.c.l.b16 %v876
  %v921 = vunpack.c.l.b16 %v877
  %v922 = vunpack.c.l.b16 %v878
  %v923 = vunpack.c.l.b16 %v879
  %v924 = vunpack.c.l.b16 %v880
  %v925 = vunpack.c.l.b16 %v881
  %v926 = vunpack.c.l.b16 %v882
  %v927 = vunpack.c.l.b16 %v883
  %v928 = vunpack.c.l.b16 %v884
  %v929 = vunpack.c.l.b16 %v885
  %v930 = vunpack.c.l.b16 %v886
  %v931 = vunpack.c.l.b16 %v887
  %v932 = vunpack.c.l.b16 %v888
  %v933 = vunpack.c.l.b16 %v889
  %v934 = vunpack.c.l.b16 %v890
  %v935 = vpack.c.b16 %v916, %v915
  %v936 = vpack.c.b16 %v918, %v917
  %v937 = vpack.c.b16 %v920, %v919
  %v938 = vpack.c.b16 %v922, %v921
  %v939 = vpack.c.b16 %v924, %v923
  %v940 = vpack.c.b16 %v926, %v925
  %v941 = vpack.c.b16 %v928, %v927
  %v942 = vpack.c.b16 %v930, %v929
  %v943 = vpack.c.b16 %v932, %v931
  %v944 = vpack.c.b16 %v934, %v933
  %955 = vmatpush.bf16.msra.mxu0 %v942
  %956 = vmatpush.bf16.msra.mxu0 %v941
  %957 = vmatpush.bf16.msra.mxu0 %v940
  %958 = vmatpush.bf16.msra.mxu0 %v939
  %959 = vmatpush.bf16.msra.mxu0 %v938
  %960 = vmatpush.bf16.msra.mxu0 %v937
  %961 = vmatpush.bf16.msra.mxu0 %v936
  %962 = vmatpush.bf16.msra.mxu0 %v935
  %963 = vmatmul.bf16.gmra.mxu0 %v870
  %v964 = vpop.f32.mrf.mxu0
  %v965 = vadd.f32 %v893, %v964
  %v966 = vpop.f32.mrf.mxu0
  %967 = vdwg.mxu0
  %968 = vmatpush.bf16.msra.mxu0 0
  %969 = vmatpush.bf16.msra.mxu0 0
  %970 = vmatpush.bf16.msra.mxu0 0
  %971 = vmatpush.bf16.msra.mxu0 0
  %972 = vmatpush.bf16.msra.mxu0 0
  %973 = vmatpush.bf16.msra.mxu0 0
  %974 = vmatpush.bf16.msra.mxu0 %v944
  %975 = vmatpush.bf16.msra.mxu0 %v943
  %976 = vmatmul.bf16.gmra.mxu0 %v830
  %v977 = vpop.f32.mrf.mxu0
  %v978 = vadd.f32 %v965, %v977
  %v979 = vpop.f32.mrf.mxu0
  %980 = vdwg.mxu0
  %v981 = vxor.u32 %v978, 2147483648
  %v982 = vmul.f32 %v981, 1.442695
  %v983 = vpow.pop %v982
  %v984 = vadd.f32 %v983, 1.0
  %v985 = vrcp.pop %v984
  %v986 = vmul.f32 %v984, %v985
  %v987 = vsub.f32 1.0, %v986
  %v988 = vmul.f32 %v985, %v987
  %v989 = vadd.f32 %v985, %v988
  %vm990 = vweird.f32 %v984
  %vm991 = vweird.f32 %v985
  %vm992 = vmor %vm990, %vm991
  %v993 = vsel %vm992, %v985, %v989
  %v994 = vand.u32 2147483647, %v984
  %vm995 = vcmp.eq.f32.partialorder %v994, 8.507059e+37
  %v996 = vand.u32 %v984, 2147483648
  %v997 = vor.u32 1.1754944e-38, %v996
  %v998 = vsel %vm995, %v997, %v993
  %v999 = vmul.f32 1.0, %v998
  %1001 = vrot.lane.b32.xlu0 %v978, 64
  %v1002 = vpop.permute.xlu0 %1001
  %v1004 = vmul.f32 %v999, %v1002
  %1006 = vrot.lane.b32.xlu0 %v1004, 32
  %v1007 = vpop.permute.xlu0 %1006
  %v1009 = vadd.f32 %v978, %v1007
  %v1010 = vtanh.pop %v1009
  %v1011 = vsub.f32 1.0, %v999
  %1013 = vrot.lane.b32.xlu0 %v1010, 64
  %v1014 = vpop.permute.xlu0 %1013
  %v1016 = vmul.f32 %v1011, %v1014
  %v1017 = vmul.f32 %v999, %v807
  %v1018 = vadd.f32 %v1016, %v1017
  %v1019 = vpack.c.bf16 %v1018, %v1018
  %v1020 = vld [vmem:[%s3] sm:$0xf]
  %v1021 = vld [vmem:[%s3 + $0x4] sm:$0xf]
  %v1022 = vld [vmem:[%s3 + $0x8] sm:$0xf]
  %v1023 = vld [vmem:[%s3 + $0xc] sm:$0xf]
  %v1024 = vld [vmem:[%s4] sm:$0x1]
  %v1026 = vperm.slane %v1024, 0
  %v1032 = vunpack.c.l.b16 %v1020
  %v1033 = vunpack.c.l.b16 %v1021
  %v1034 = vunpack.c.l.b16 %v1022
  %v1035 = vunpack.c.l.b16 %v1023
  %v1036 = vpack.c.b16 %v1033, %v1032
  %v1037 = vpack.c.b16 %v1035, %v1034
  %v1041 = vsel %vm107, %v1019, 0
  %1043 = vmatpush.bf16.msra.mxu0 0
  %1044 = vmatpush.bf16.msra.mxu0 0
  %1045 = vmatpush.bf16.msra.mxu0 0
  %1046 = vmatpush.bf16.msra.mxu0 0
  %1047 = vmatpush.bf16.msra.mxu0 0
  %1048 = vmatpush.bf16.msra.mxu0 0
  %1049 = vmatpush.bf16.msra.mxu0 %v1037
  %1050 = vmatpush.bf16.msra.mxu0 %v1036
  %1051 = vmatmul.bf16.gmra.mxu0 %v1041
  %v1052 = vpop.f32.mrf.mxu0
  %v1053 = vadd.f32 %v1026, %v1052
  %v1054 = vpop.f32.mrf.mxu0
  %1055 = vdwg.mxu0
  %v1056 = vxor.u32 %v1053, 2147483648
  %v1057 = vmul.f32 %v1056, 1.442695
  %v1058 = vpow.pop %v1057
  %v1059 = vadd.f32 %v1058, 1.0
  %v1060 = vrcp.pop %v1059
  %v1061 = vmul.f32 %v1059, %v1060
  %v1062 = vsub.f32 1.0, %v1061
  %v1063 = vmul.f32 %v1060, %v1062
  %v1064 = vadd.f32 %v1060, %v1063
  %vm1065 = vweird.f32 %v1059
  %vm1066 = vweird.f32 %v1060
  %vm1067 = vmor %vm1065, %vm1066
  %v1068 = vsel %vm1067, %v1060, %v1064
  %v1069 = vand.u32 2147483647, %v1059
  %vm1070 = vcmp.eq.f32.partialorder %v1069, 8.507059e+37
  %v1071 = vand.u32 %v1059, 2147483648
  %v1072 = vor.u32 1.1754944e-38, %v1071
  %v1073 = vsel %vm1070, %v1072, %v1068
  %v1074 = vmul.f32 1.0, %v1073
  %s1075 = scalar_lea.vmem %s5, 40
  %1076 = vst [vmem:[%s1075] sm:$0xff] %v1074
  %s1077 = scalar_lea.vmem %s0, 20
  %v1078 = vld [vmem:[%s1077] sm:$0xf]
  %v1079 = vunpack.c.l.bf16 %v1078
  %v1080 = vmul.f32 %v1079, %v1074
  %v1081 = vpack.c.bf16 %v1080, %v1080
  %v1082 = vld [vmem:[%s1] sm:$0xf]
  %v1083 = vld [vmem:[%s1 + $0x4] sm:$0xf]
  %v1084 = vld [vmem:[%s1 + $0x8] sm:$0xf]
  %v1085 = vld [vmem:[%s1 + $0xc] sm:$0xf]
  %v1086 = vld [vmem:[%s1 + $0x10] sm:$0xf]
  %v1087 = vld [vmem:[%s1 + $0x14] sm:$0xf]
  %v1088 = vld [vmem:[%s1 + $0x18] sm:$0xf]
  %v1089 = vld [vmem:[%s1 + $0x1c] sm:$0xf]
  %v1090 = vld [vmem:[%s1 + $0x20] sm:$0xf]
  %v1091 = vld [vmem:[%s1 + $0x24] sm:$0xf]
  %v1092 = vld [vmem:[%s1 + $0x28] sm:$0xf]
  %v1093 = vld [vmem:[%s1 + $0x2c] sm:$0xf]
  %v1094 = vld [vmem:[%s1 + $0x30] sm:$0xf]
  %v1095 = vld [vmem:[%s1 + $0x34] sm:$0xf]
  %v1096 = vld [vmem:[%s1 + $0x38] sm:$0xf]
  %v1097 = vld [vmem:[%s1 + $0x3c] sm:$0xf]
  %v1098 = vld [vmem:[%s1 + $0x40] sm:$0xf]
  %v1099 = vld [vmem:[%s1 + $0x44] sm:$0xf]
  %v1100 = vld [vmem:[%s1 + $0x48] sm:$0xf]
  %v1101 = vld [vmem:[%s1 + $0x4c] sm:$0xf]
  %v1102 = vld [vmem:[%s2] sm:$0x1]
  %v1104 = vperm.slane %v1102, 0
  %v1126 = vunpack.c.l.b16 %v1082
  %v1127 = vunpack.c.l.b16 %v1083
  %v1128 = vunpack.c.l.b16 %v1084
  %v1129 = vunpack.c.l.b16 %v1085
  %v1130 = vunpack.c.l.b16 %v1086
  %v1131 = vunpack.c.l.b16 %v1087
  %v1132 = vunpack.c.l.b16 %v1088
  %v1133 = vunpack.c.l.b16 %v1089
  %v1134 = vunpack.c.l.b16 %v1090
  %v1135 = vunpack.c.l.b16 %v1091
  %v1136 = vunpack.c.l.b16 %v1092
  %v1137 = vunpack.c.l.b16 %v1093
  %v1138 = vunpack.c.l.b16 %v1094
  %v1139 = vunpack.c.l.b16 %v1095
  %v1140 = vunpack.c.l.b16 %v1096
  %v1141 = vunpack.c.l.b16 %v1097
  %v1142 = vunpack.c.l.b16 %v1098
  %v1143 = vunpack.c.l.b16 %v1099
  %v1144 = vunpack.c.l.b16 %v1100
  %v1145 = vunpack.c.l.b16 %v1101
  %v1146 = vpack.c.b16 %v1127, %v1126
  %v1147 = vpack.c.b16 %v1129, %v1128
  %v1148 = vpack.c.b16 %v1131, %v1130
  %v1149 = vpack.c.b16 %v1133, %v1132
  %v1150 = vpack.c.b16 %v1135, %v1134
  %v1151 = vpack.c.b16 %v1137, %v1136
  %v1152 = vpack.c.b16 %v1139, %v1138
  %v1153 = vpack.c.b16 %v1141, %v1140
  %v1154 = vpack.c.b16 %v1143, %v1142
  %v1155 = vpack.c.b16 %v1145, %v1144
  %1166 = vmatpush.bf16.msra.mxu0 %v1153
  %1167 = vmatpush.bf16.msra.mxu0 %v1152
  %1168 = vmatpush.bf16.msra.mxu0 %v1151
  %1169 = vmatpush.bf16.msra.mxu0 %v1150
  %1170 = vmatpush.bf16.msra.mxu0 %v1149
  %1171 = vmatpush.bf16.msra.mxu0 %v1148
  %1172 = vmatpush.bf16.msra.mxu0 %v1147
  %1173 = vmatpush.bf16.msra.mxu0 %v1146
  %1174 = vmatmul.bf16.gmra.mxu0 %v1081
  %v1175 = vpop.f32.mrf.mxu0
  %v1176 = vadd.f32 %v1104, %v1175
  %v1177 = vpop.f32.mrf.mxu0
  %1178 = vdwg.mxu0
  %1179 = vmatpush.bf16.msra.mxu0 0
  %1180 = vmatpush.bf16.msra.mxu0 0
  %1181 = vmatpush.bf16.msra.mxu0 0
  %1182 = vmatpush.bf16.msra.mxu0 0
  %1183 = vmatpush.bf16.msra.mxu0 0
  %1184 = vmatpush.bf16.msra.mxu0 0
  %1185 = vmatpush.bf16.msra.mxu0 %v1155
  %1186 = vmatpush.bf16.msra.mxu0 %v1154
  %1187 = vmatmul.bf16.gmra.mxu0 %v1041
  %v1188 = vpop.f32.mrf.mxu0
  %v1189 = vadd.f32 %v1176, %v1188
  %v1190 = vpop.f32.mrf.mxu0
  %1191 = vdwg.mxu0
  %v1192 = vxor.u32 %v1189, 2147483648
  %v1193 = vmul.f32 %v1192, 1.442695
  %v1194 = vpow.pop %v1193
  %v1195 = vadd.f32 %v1194, 1.0
  %v1196 = vrcp.pop %v1195
  %v1197 = vmul.f32 %v1195, %v1196
  %v1198 = vsub.f32 1.0, %v1197
  %v1199 = vmul.f32 %v1196, %v1198
  %v1200 = vadd.f32 %v1196, %v1199
  %vm1201 = vweird.f32 %v1195
  %vm1202 = vweird.f32 %v1196
  %vm1203 = vmor %vm1201, %vm1202
  %v1204 = vsel %vm1203, %v1196, %v1200
  %v1205 = vand.u32 2147483647, %v1195
  %vm1206 = vcmp.eq.f32.partialorder %v1205, 8.507059e+37
  %v1207 = vand.u32 %v1195, 2147483648
  %v1208 = vor.u32 1.1754944e-38, %v1207
  %v1209 = vsel %vm1206, %v1208, %v1204
  %v1210 = vmul.f32 1.0, %v1209
  %1212 = vrot.lane.b32.xlu0 %v1189, 64
  %v1213 = vpop.permute.xlu0 %1212
  %v1215 = vmul.f32 %v1210, %v1213
  %1217 = vrot.lane.b32.xlu0 %v1215, 32
  %v1218 = vpop.permute.xlu0 %1217
  %v1220 = vadd.f32 %v1189, %v1218
  %v1221 = vtanh.pop %v1220
  %v1222 = vsub.f32 1.0, %v1210
  %1224 = vrot.lane.b32.xlu0 %v1221, 64
  %v1225 = vpop.permute.xlu0 %1224
  %v1227 = vmul.f32 %v1222, %v1225
  %v1228 = vmul.f32 %v1210, %v1018
  %v1229 = vadd.f32 %v1227, %v1228
  %v1230 = vpack.c.bf16 %v1229, %v1229
  %v1231 = vld [vmem:[%s3] sm:$0xf]
  %v1232 = vld [vmem:[%s3 + $0x4] sm:$0xf]
  %v1233 = vld [vmem:[%s3 + $0x8] sm:$0xf]
  %v1234 = vld [vmem:[%s3 + $0xc] sm:$0xf]
  %v1235 = vld [vmem:[%s4] sm:$0x1]
  %v1237 = vperm.slane %v1235, 0
  %v1243 = vunpack.c.l.b16 %v1231
  %v1244 = vunpack.c.l.b16 %v1232
  %v1245 = vunpack.c.l.b16 %v1233
  %v1246 = vunpack.c.l.b16 %v1234
  %v1247 = vpack.c.b16 %v1244, %v1243
  %v1248 = vpack.c.b16 %v1246, %v1245
  %v1252 = vsel %vm107, %v1230, 0
  %1254 = vmatpush.bf16.msra.mxu0 0
  %1255 = vmatpush.bf16.msra.mxu0 0
  %1256 = vmatpush.bf16.msra.mxu0 0
  %1257 = vmatpush.bf16.msra.mxu0 0
  %1258 = vmatpush.bf16.msra.mxu0 0
  %1259 = vmatpush.bf16.msra.mxu0 0
  %1260 = vmatpush.bf16.msra.mxu0 %v1248
  %1261 = vmatpush.bf16.msra.mxu0 %v1247
  %1262 = vmatmul.bf16.gmra.mxu0 %v1252
  %v1263 = vpop.f32.mrf.mxu0
  %v1264 = vadd.f32 %v1237, %v1263
  %v1265 = vpop.f32.mrf.mxu0
  %1266 = vdwg.mxu0
  %v1267 = vxor.u32 %v1264, 2147483648
  %v1268 = vmul.f32 %v1267, 1.442695
  %v1269 = vpow.pop %v1268
  %v1270 = vadd.f32 %v1269, 1.0
  %v1271 = vrcp.pop %v1270
  %v1272 = vmul.f32 %v1270, %v1271
  %v1273 = vsub.f32 1.0, %v1272
  %v1274 = vmul.f32 %v1271, %v1273
  %v1275 = vadd.f32 %v1271, %v1274
  %vm1276 = vweird.f32 %v1270
  %vm1277 = vweird.f32 %v1271
  %vm1278 = vmor %vm1276, %vm1277
  %v1279 = vsel %vm1278, %v1271, %v1275
  %v1280 = vand.u32 2147483647, %v1270
  %vm1281 = vcmp.eq.f32.partialorder %v1280, 8.507059e+37
  %v1282 = vand.u32 %v1270, 2147483648
  %v1283 = vor.u32 1.1754944e-38, %v1282
  %v1284 = vsel %vm1281, %v1283, %v1279
  %v1285 = vmul.f32 1.0, %v1284
  %s1286 = scalar_lea.vmem %s5, 48
  %1287 = vst [vmem:[%s1286] sm:$0xff] %v1285
  %s1288 = scalar_lea.vmem %s0, 24
  %v1289 = vld [vmem:[%s1288] sm:$0xf]
  %v1290 = vunpack.c.l.bf16 %v1289
  %v1291 = vmul.f32 %v1290, %v1285
  %v1292 = vpack.c.bf16 %v1291, %v1291
  %v1293 = vld [vmem:[%s1] sm:$0xf]
  %v1294 = vld [vmem:[%s1 + $0x4] sm:$0xf]
  %v1295 = vld [vmem:[%s1 + $0x8] sm:$0xf]
  %v1296 = vld [vmem:[%s1 + $0xc] sm:$0xf]
  %v1297 = vld [vmem:[%s1 + $0x10] sm:$0xf]
  %v1298 = vld [vmem:[%s1 + $0x14] sm:$0xf]
  %v1299 = vld [vmem:[%s1 + $0x18] sm:$0xf]
  %v1300 = vld [vmem:[%s1 + $0x1c] sm:$0xf]
  %v1301 = vld [vmem:[%s1 + $0x20] sm:$0xf]
  %v1302 = vld [vmem:[%s1 + $0x24] sm:$0xf]
  %v1303 = vld [vmem:[%s1 + $0x28] sm:$0xf]
  %v1304 = vld [vmem:[%s1 + $0x2c] sm:$0xf]
  %v1305 = vld [vmem:[%s1 + $0x30] sm:$0xf]
  %v1306 = vld [vmem:[%s1 + $0x34] sm:$0xf]
  %v1307 = vld [vmem:[%s1 + $0x38] sm:$0xf]
  %v1308 = vld [vmem:[%s1 + $0x3c] sm:$0xf]
  %v1309 = vld [vmem:[%s1 + $0x40] sm:$0xf]
  %v1310 = vld [vmem:[%s1 + $0x44] sm:$0xf]
  %v1311 = vld [vmem:[%s1 + $0x48] sm:$0xf]
  %v1312 = vld [vmem:[%s1 + $0x4c] sm:$0xf]
  %v1313 = vld [vmem:[%s2] sm:$0x1]
  %v1315 = vperm.slane %v1313, 0
  %v1337 = vunpack.c.l.b16 %v1293
  %v1338 = vunpack.c.l.b16 %v1294
  %v1339 = vunpack.c.l.b16 %v1295
  %v1340 = vunpack.c.l.b16 %v1296
  %v1341 = vunpack.c.l.b16 %v1297
  %v1342 = vunpack.c.l.b16 %v1298
  %v1343 = vunpack.c.l.b16 %v1299
  %v1344 = vunpack.c.l.b16 %v1300
  %v1345 = vunpack.c.l.b16 %v1301
  %v1346 = vunpack.c.l.b16 %v1302
  %v1347 = vunpack.c.l.b16 %v1303
  %v1348 = vunpack.c.l.b16 %v1304
  %v1349 = vunpack.c.l.b16 %v1305
  %v1350 = vunpack.c.l.b16 %v1306
  %v1351 = vunpack.c.l.b16 %v1307
  %v1352 = vunpack.c.l.b16 %v1308
  %v1353 = vunpack.c.l.b16 %v1309
  %v1354 = vunpack.c.l.b16 %v1310
  %v1355 = vunpack.c.l.b16 %v1311
  %v1356 = vunpack.c.l.b16 %v1312
  %v1357 = vpack.c.b16 %v1338, %v1337
  %v1358 = vpack.c.b16 %v1340, %v1339
  %v1359 = vpack.c.b16 %v1342, %v1341
  %v1360 = vpack.c.b16 %v1344, %v1343
  %v1361 = vpack.c.b16 %v1346, %v1345
  %v1362 = vpack.c.b16 %v1348, %v1347
  %v1363 = vpack.c.b16 %v1350, %v1349
  %v1364 = vpack.c.b16 %v1352, %v1351
  %v1365 = vpack.c.b16 %v1354, %v1353
  %v1366 = vpack.c.b16 %v1356, %v1355
  %1377 = vmatpush.bf16.msra.mxu0 %v1364
  %1378 = vmatpush.bf16.msra.mxu0 %v1363
  %1379 = vmatpush.bf16.msra.mxu0 %v1362
  %1380 = vmatpush.bf16.msra.mxu0 %v1361
  %1381 = vmatpush.bf16.msra.mxu0 %v1360
  %1382 = vmatpush.bf16.msra.mxu0 %v1359
  %1383 = vmatpush.bf16.msra.mxu0 %v1358
  %1384 = vmatpush.bf16.msra.mxu0 %v1357
  %1385 = vmatmul.bf16.gmra.mxu0 %v1292
  %v1386 = vpop.f32.mrf.mxu0
  %v1387 = vadd.f32 %v1315, %v1386
  %v1388 = vpop.f32.mrf.mxu0
  %1389 = vdwg.mxu0
  %1390 = vmatpush.bf16.msra.mxu0 0
  %1391 = vmatpush.bf16.msra.mxu0 0
  %1392 = vmatpush.bf16.msra.mxu0 0
  %1393 = vmatpush.bf16.msra.mxu0 0
  %1394 = vmatpush.bf16.msra.mxu0 0
  %1395 = vmatpush.bf16.msra.mxu0 0
  %1396 = vmatpush.bf16.msra.mxu0 %v1366
  %1397 = vmatpush.bf16.msra.mxu0 %v1365
  %1398 = vmatmul.bf16.gmra.mxu0 %v1252
  %v1399 = vpop.f32.mrf.mxu0
  %v1400 = vadd.f32 %v1387, %v1399
  %v1401 = vpop.f32.mrf.mxu0
  %1402 = vdwg.mxu0
  %v1403 = vxor.u32 %v1400, 2147483648
  %v1404 = vmul.f32 %v1403, 1.442695
  %v1405 = vpow.pop %v1404
  %v1406 = vadd.f32 %v1405, 1.0
  %v1407 = vrcp.pop %v1406
  %v1408 = vmul.f32 %v1406, %v1407
  %v1409 = vsub.f32 1.0, %v1408
  %v1410 = vmul.f32 %v1407, %v1409
  %v1411 = vadd.f32 %v1407, %v1410
  %vm1412 = vweird.f32 %v1406
  %vm1413 = vweird.f32 %v1407
  %vm1414 = vmor %vm1412, %vm1413
  %v1415 = vsel %vm1414, %v1407, %v1411
  %v1416 = vand.u32 2147483647, %v1406
  %vm1417 = vcmp.eq.f32.partialorder %v1416, 8.507059e+37
  %v1418 = vand.u32 %v1406, 2147483648
  %v1419 = vor.u32 1.1754944e-38, %v1418
  %v1420 = vsel %vm1417, %v1419, %v1415
  %v1421 = vmul.f32 1.0, %v1420
  %1423 = vrot.lane.b32.xlu0 %v1400, 64
  %v1424 = vpop.permute.xlu0 %1423
  %v1426 = vmul.f32 %v1421, %v1424
  %1428 = vrot.lane.b32.xlu0 %v1426, 32
  %v1429 = vpop.permute.xlu0 %1428
  %v1431 = vadd.f32 %v1400, %v1429
  %v1432 = vtanh.pop %v1431
  %v1433 = vsub.f32 1.0, %v1421
  %1435 = vrot.lane.b32.xlu0 %v1432, 64
  %v1436 = vpop.permute.xlu0 %1435
  %v1438 = vmul.f32 %v1433, %v1436
  %v1439 = vmul.f32 %v1421, %v1229
  %v1440 = vadd.f32 %v1438, %v1439
  %v1441 = vpack.c.bf16 %v1440, %v1440
  %v1442 = vld [vmem:[%s3] sm:$0xf]
  %v1443 = vld [vmem:[%s3 + $0x4] sm:$0xf]
  %v1444 = vld [vmem:[%s3 + $0x8] sm:$0xf]
  %v1445 = vld [vmem:[%s3 + $0xc] sm:$0xf]
  %v1446 = vld [vmem:[%s4] sm:$0x1]
  %v1448 = vperm.slane %v1446, 0
  %v1454 = vunpack.c.l.b16 %v1442
  %v1455 = vunpack.c.l.b16 %v1443
  %v1456 = vunpack.c.l.b16 %v1444
  %v1457 = vunpack.c.l.b16 %v1445
  %v1458 = vpack.c.b16 %v1455, %v1454
  %v1459 = vpack.c.b16 %v1457, %v1456
  %v1463 = vsel %vm107, %v1441, 0
  %1465 = vmatpush.bf16.msra.mxu0 0
  %1466 = vmatpush.bf16.msra.mxu0 0
  %1467 = vmatpush.bf16.msra.mxu0 0
  %1468 = vmatpush.bf16.msra.mxu0 0
  %1469 = vmatpush.bf16.msra.mxu0 0
  %1470 = vmatpush.bf16.msra.mxu0 0
  %1471 = vmatpush.bf16.msra.mxu0 %v1459
  %1472 = vmatpush.bf16.msra.mxu0 %v1458
  %1473 = vmatmul.bf16.gmra.mxu0 %v1463
  %v1474 = vpop.f32.mrf.mxu0
  %v1475 = vadd.f32 %v1448, %v1474
  %v1476 = vpop.f32.mrf.mxu0
  %1477 = vdwg.mxu0
  %v1478 = vxor.u32 %v1475, 2147483648
  %v1479 = vmul.f32 %v1478, 1.442695
  %v1480 = vpow.pop %v1479
  %v1481 = vadd.f32 %v1480, 1.0
  %v1482 = vrcp.pop %v1481
  %v1483 = vmul.f32 %v1481, %v1482
  %v1484 = vsub.f32 1.0, %v1483
  %v1485 = vmul.f32 %v1482, %v1484
  %v1486 = vadd.f32 %v1482, %v1485
  %vm1487 = vweird.f32 %v1481
  %vm1488 = vweird.f32 %v1482
  %vm1489 = vmor %vm1487, %vm1488
  %v1490 = vsel %vm1489, %v1482, %v1486
  %v1491 = vand.u32 2147483647, %v1481
  %vm1492 = vcmp.eq.f32.partialorder %v1491, 8.507059e+37
  %v1493 = vand.u32 %v1481, 2147483648
  %v1494 = vor.u32 1.1754944e-38, %v1493
  %v1495 = vsel %vm1492, %v1494, %v1490
  %v1496 = vmul.f32 1.0, %v1495
  %s1497 = scalar_lea.vmem %s5, 56
  %1498 = vst [vmem:[%s1497] sm:$0xff] %v1496
  // Predicated region
  $region22: #{generator_forward.1} parent=0 // pred_check
    _
  $region23: #{generator_forward.1} parent=0 // pred_check_branch
    %1500 = sbr.rel (0) target = $region25
  $region24: #{generator_forward.1} parent=0 // pred_region
    _
  $region25: #{generator_forward.1} parent=0 // pred_fallthru
    _
  // Predicated region
  $region26: #{generator_forward.1} parent=0 // pred_check
    _
  $region27: #{generator_forward.1} parent=0 // pred_check_branch
    %1502 = sbr.rel (0) target = $region29
  $region28: #{generator_forward.1} parent=0 // pred_region
    _
  $region29: #{generator_forward.1} parent=0 // pred_fallthru
    _

</llo_original>
